<compile_context>
chip_gen: v5e
topology: v5e:2x2
jax: 0.10.0
libtpu: 0.0.40
codegen_flags: <defaults>
</compile_context>

<pallas_src>
import functools

import jax
import jax.numpy as jnp
import numpy as np
from jax.experimental import pallas as pl
from jax.experimental.pallas import tpu as pltpu

_EPS = 1e-5
_LANE = 128
_MAX_TM = 512                      # mem-bound sweet spot (~85% HBM roofline)
_MAX_TK = 512                      # K tile upper bound (contraction axis)
_VMEM_LIMIT = 64 * 1024 * 1024     # explicit budget, <= v7x physical VMEM


def _round_up(n, m):
    return ((n + m - 1) // m) * m


def _pad2d(a, rows, cols):
    r, c = a.shape
    if r == rows and c == cols:
        return a
    return jnp.pad(a, ((0, rows - r), (0, cols - c)))


# --------------------------------------------------------------------------
# Kernel 1: conv-as-GEMM tile (bf16 operands, f32 MXU accumulation into a
# resident VMEM accumulator over the K grid axis) + per-tile partial
# BatchNorm statistics [sum, sum_sq] emitted on the last K step.
# --------------------------------------------------------------------------
def _matmul_stats_kernel(p_ref, w_ref, y_ref, stats_ref, acc_ref):
    @pl.when(pl.program_id(1) == 0)
    def _():
        acc_ref[...] = jnp.zeros_like(acc_ref)

    acc_ref[...] += jnp.dot(p_ref[...], w_ref[...],
                            preferred_element_type=jnp.float32)

    @pl.when(pl.program_id(1) == pl.num_programs(1) - 1)
    def _():
        acc = acc_ref[...]
        y_ref[...] = acc.astype(y_ref.dtype)
        # Two row-slice writes (no concatenate / no read-modify-write).
        stats_ref[0, 0:1, :] = jnp.sum(acc, axis=0, keepdims=True)
        stats_ref[0, 1:2, :] = jnp.sum(acc * acc, axis=0, keepdims=True)


# --------------------------------------------------------------------------
# Kernel 2: fused BN affine with precomputed scale/shift (+ optional residual,
# optional ReLU). Pure FMA/max elementwise pass, math in f32.
# --------------------------------------------------------------------------
def _make_bn_kernel(relu, has_res):
    def kernel(*refs):
        if has_res:
            y_ref, ss_ref, r_ref, o_ref = refs
        else:
            y_ref, ss_ref, o_ref = refs
            r_ref = None
        out = y_ref[...].astype(jnp.float32) * ss_ref[0:1, :] + ss_ref[1:2, :]
        if r_ref is not None:
            out = out + r_ref[...].astype(jnp.float32)
        if relu:
            out = jnp.maximum(out, 0.0)
        o_ref[...] = out.astype(o_ref.dtype)
    return kernel


def conv_bn_pallas(patches, w_flat, gamma, beta, *, relu, residual=None,
                   out_dtype=jnp.float32, eps=_EPS):
    """conv (im2col GEMM) + training-mode BatchNorm (+residual, +ReLU).

    patches: (M, K), w_flat: (K, C). Returns (M, C) in `out_dtype`.
    """
    M, K = patches.shape
    C = w_flat.shape[1]

    # Lane-dense channel dim; pad rows so every tile is full (general shapes).
    C_pad = _round_up(C, _LANE)
    TM = min(_MAX_TM, _round_up(M, 8))
    M_pad = _round_up(M, TM)
    n_tiles = M_pad // TM

    # Contraction (K) tiling: single full block when it fits, otherwise
    # 128-aligned tiles accumulated over an "arbitrary" grid axis.
    if K <= _MAX_TK:
        tk, K_pad = K, K
    else:
        n_k_est = pl.cdiv(K, _MAX_TK)
        tk = _round_up(pl.cdiv(K, n_k_est), _LANE)
        K_pad = _round_up(K, tk)
    n_k = K_pad // tk

    p = _pad2d(patches.astype(jnp.bfloat16), M_pad, K_pad)
    w = _pad2d(w_flat.astype(jnp.bfloat16), K_pad, C_pad)

    # ---- conv GEMM + per-tile partial stats --------------------------------
    y, stats_part = pl.pallas_call(
        _matmul_stats_kernel,
        out_shape=(jax.ShapeDtypeStruct((M_pad, C_pad), jnp.bfloat16),
                   jax.ShapeDtypeStruct((n_tiles, 2, C_pad), jnp.float32)),
        grid=(n_tiles, n_k),
        in_specs=[pl.BlockSpec((TM, tk), lambda i, k: (i, k)),
                  pl.BlockSpec((tk, C_pad), lambda i, k: (k, 0))],
        out_specs=(pl.BlockSpec((TM, C_pad), lambda i, k: (i, 0)),
                   pl.BlockSpec((1, 2, C_pad), lambda i, k: (i, 0, 0))),
        scratch_shapes=[pltpu.VMEM((TM, C_pad), jnp.float32)],
        compiler_params=pltpu.CompilerParams(
            dimension_semantics=("parallel", "arbitrary"),
            vmem_limit_bytes=_VMEM_LIMIT),
    )(p, w)

    # ---- BN scale/shift from batch statistics (tiny, plain JAX) ------------
    # Zero-padded rows contribute nothing to the sums; divide by the true M.
    # NOTE: E[x^2]-E[x]^2 in f32 is adequate at activation scales; clamp >= 0.
    stats = jnp.sum(stats_part, axis=0)                         # (2, C_pad)
    mean = stats[0] / float(M)
    var = jnp.maximum(stats[1] / float(M) - mean * mean, 0.0)   # biased (torch BN)
    inv_std = jax.lax.rsqrt(var + eps)
    g = _pad2d(gamma.reshape(1, C).astype(jnp.float32), 1, C_pad)[0]
    b = _pad2d(beta.reshape(1, C).astype(jnp.float32), 1, C_pad)[0]
    scale = g * inv_std
    shift = b - mean * scale
    ss = jnp.stack([scale, shift], axis=0)                      # (2, C_pad)

    # ---- fused affine (+ residual + relu) -----------------------------------
    args = [y, ss]
    in_specs = [pl.BlockSpec((TM, C_pad), lambda i: (i, 0)),
                pl.BlockSpec((2, C_pad), lambda i: (0, 0))]
    if residual is not None:
        args.append(_pad2d(residual.astype(jnp.bfloat16), M_pad, C_pad))
        in_specs.append(pl.BlockSpec((TM, C_pad), lambda i: (i, 0)))

    out_dtype = jnp.dtype(out_dtype)
    io_alias = {0: 0} if out_dtype == y.dtype else {}   # BN output overwrites y

    out = pl.pallas_call(
        _make_bn_kernel(relu, residual is not None),
        out_shape=jax.ShapeDtypeStruct((M_pad, C_pad), out_dtype),
        grid=(n_tiles,),
        in_specs=in_specs,
        out_specs=pl.BlockSpec((TM, C_pad), lambda i: (i, 0)),
        input_output_aliases=io_alias,
        compiler_params=pltpu.CompilerParams(
            dimension_semantics=("parallel",),
            vmem_limit_bytes=_VMEM_LIMIT),
    )(*args)
    return out[:M, :C]


# --------------------------------------------------------------------------
# Plain-JAX glue: im2col patch extraction (NHWC).
# --------------------------------------------------------------------------
def _im2col(x_nhwc, ksize, stride, pad):
    N, H, W, C = x_nhwc.shape
    Ho = (H + 2 * pad - ksize) // stride + 1
    Wo = (W + 2 * pad - ksize) // stride + 1
    xp = jnp.pad(x_nhwc, ((0, 0), (pad, pad), (pad, pad), (0, 0)))
    cols = []
    for kh in range(ksize):
        for kw in range(ksize):
            cols.append(xp[:, kh:kh + Ho * stride:stride, kw:kw + Wo * stride:stride, :])
    patches = jnp.concatenate(cols, axis=-1)     # (N, Ho, Wo, k*k*C), order [kh, kw, c]
    return patches.reshape(N * Ho * Wo, ksize * ksize * C), Ho, Wo


# --------------------------------------------------------------------------
# BasicBlockEnc forward. Conv weights are stored HWIO: (KH, KW, Cin, Cout).
# --------------------------------------------------------------------------
@functools.partial(jax.jit, static_argnames=("stride",))
def basic_block_enc(x_nchw, params, stride=1):
    x = jnp.transpose(x_nchw, (0, 2, 3, 1)).astype(jnp.float32)  # NCHW -> NHWC
    N, H, W, Cin = x.shape
    planes = Cin * stride

    # conv1 (3x3, stride) + bn1 + relu   (bf16 intermediate for the next GEMM)
    p1, Ho, Wo = _im2col(x, 3, stride, 1)
    w1 = params["w1"].reshape(9 * Cin, planes)
    out1 = conv_bn_pallas(p1, w1, params["g1"], params["b1"],
                          relu=True, out_dtype=jnp.bfloat16)

    # shortcut
    if stride == 1:
        short = x.reshape(N * H * W, Cin).astype(jnp.bfloat16)
    else:
        ps = x[:, ::stride, ::stride, :].reshape(N * Ho * Wo, Cin)   # 1x1 conv, stride
        ws = params["ws"].reshape(Cin, planes)
        short = conv_bn_pallas(ps, ws, params["gs"], params["bs"],
                               relu=False, out_dtype=jnp.bfloat16)

    # conv2 (3x3, stride 1) + bn2 + shortcut add + relu
    p2, _, _ = _im2col(out1.reshape(N, Ho, Wo, planes), 3, 1, 1)
    w2 = params["w2"].reshape(9 * planes, planes)
    out = conv_bn_pallas(p2, w2, params["g2"], params["b2"],
                         relu=True, residual=short, out_dtype=jnp.float32)

    return jnp.transpose(out.reshape(N, Ho, Wo, planes), (0, 3, 1, 2))  # NHWC -> NCHW


# --------------------------------------------------------------------------
# Pure-JAX f32 reference (mirrors the PyTorch module, training-mode BN).
# --------------------------------------------------------------------------
def _reference(x_nchw, params, stride, eps=_EPS):
    def conv(x, w_hwio, s):
        w_oihw = jnp.transpose(w_hwio, (3, 2, 0, 1))
        pad = (w_hwio.shape[0] - 1) // 2
        return jax.lax.conv_general_dilated(
            x, w_oihw, (s, s), [(pad, pad), (pad, pad)],
            dimension_numbers=("NCHW", "OIHW", "NCHW"))

    def bn(x, g, b):
        mean = jnp.mean(x, axis=(0, 2, 3), keepdims=True)
        var = jnp.var(x, axis=(0, 2, 3), keepdims=True)
        return (x - mean) / jnp.sqrt(var + eps) * g.reshape(1, -1, 1, 1) + b.reshape(1, -1, 1, 1)

    out = jax.nn.relu(bn(conv(x_nchw, params["w1"], stride), params["g1"], params["b1"]))
    out = bn(conv(out, params["w2"], 1), params["g2"], params["b2"])
    if stride == 1:
        short = x_nchw
    else:
        short = bn(conv(x_nchw, params["ws"], stride), params["gs"], params["bs"])
    return jax.nn.relu(out + short)


if __name__ == "__main__":
    key = jax.random.PRNGKey(0)
    N, Cin, H, W = 2, 4, 16, 16

    for stride in (1, 2):
        planes = Cin * stride
        ks = jax.random.split(jax.random.fold_in(key, stride), 9)
        params = {
            "w1": 0.1 * jax.random.normal(ks[0], (3, 3, Cin, planes), jnp.float32),
            "g1": 1.0 + 0.1 * jax.random.normal(ks[1], (planes,), jnp.float32),
            "b1": 0.1 * jax.random.normal(ks[2], (planes,), jnp.float32),
            "w2": 0.1 * jax.random.normal(ks[3], (3, 3, planes, planes), jnp.float32),
            "g2": 1.0 + 0.1 * jax.random.normal(ks[4], (planes,), jnp.float32),
            "b2": 0.1 * jax.random.normal(ks[5], (planes,), jnp.float32),
        }
        if stride != 1:
            params["ws"] = 0.1 * jax.random.normal(ks[6], (1, 1, Cin, planes), jnp.float32)
            params["gs"] = 1.0 + 0.1 * jax.random.normal(ks[7], (planes,), jnp.float32)
            params["bs"] = 0.1 * jax.random.normal(ks[8], (planes,), jnp.float32)

        x = jax.random.normal(jax.random.fold_in(key, 100 + stride), (N, Cin, H, W), jnp.float32)

        out = basic_block_enc(x, params, stride=stride)
        jax.block_until_ready(out)

        ref = _reference(x, params, stride)
        assert out.shape == ref.shape, (out.shape, ref.shape)
        # Tolerance reflects bf16 MXU operands / bf16 intermediates vs. the
        # pure-f32 reference (typical max abs diff ~1e-2 through two convs+BN).
        np.testing.assert_allclose(np.asarray(out), np.asarray(ref), rtol=5e-2, atol=5e-2)

    print("KERNEL_OK")
</pallas_src>

<mosaic_0001>
module attributes {stable_mosaic.version = 11 : i64} {
  func.func @kernel(%arg0: i32, %arg1: memref<512x128xbf16, #tpu.memory_space<vmem>>, %arg2: memref<2x128xf32, #tpu.memory_space<vmem>>, %arg3: memref<512x128xbf16, #tpu.memory_space<vmem>>) attributes {dimension_semantics = [#tpu.dimension_semantics<parallel>], iteration_bounds = array<i64: 1>, scalar_prefetch = 0 : i64, scratch_operands = 0 : i64, tpu.core_type = #tpu.core_type<tc>, window_params = [{transform_indices = @transform_0, window_bounds = array<i64: 512, 128>}, {pipeline_mode = #tpu.pipeline_mode<synchronous>, transform_indices = @transform_1, window_bounds = array<i64: 2, 128>}, {transform_indices = @transform_2, window_bounds = array<i64: 512, 128>}]} {
    %c0 = arith.constant 0 : index
    %c0_0 = arith.constant 0 : index
    %0 = vector.load %arg1[%c0, %c0_0] : memref<512x128xbf16, #tpu.memory_space<vmem>>, vector<512x128xbf16>
    %1 = arith.extf %0 : vector<512x128xbf16> to vector<512x128xf32>
    %c0_1 = arith.constant 0 : index
    %c0_2 = arith.constant 0 : index
    %2 = vector.load %arg2[%c0_1, %c0_2] : memref<2x128xf32, #tpu.memory_space<vmem>>, vector<1x128xf32>
    %3 = vector.broadcast %2 : vector<1x128xf32> to vector<512x128xf32>
    %4 = arith.mulf %1, %3 : vector<512x128xf32>
    %c1 = arith.constant 1 : index
    %c0_3 = arith.constant 0 : index
    %5 = vector.load %arg2[%c1, %c0_3] : memref<2x128xf32, #tpu.memory_space<vmem>>, vector<1x128xf32>
    %6 = vector.broadcast %5 : vector<1x128xf32> to vector<512x128xf32>
    %7 = arith.addf %4, %6 : vector<512x128xf32>
    %cst = arith.constant 0.000000e+00 : f32
    %8 = vector.broadcast %cst : f32 to vector<512x128xf32>
    %9 = arith.maximumf %7, %8 : vector<512x128xf32>
    %10 = arith.truncf %9 : vector<512x128xf32> to vector<512x128xbf16>
    %c0_4 = arith.constant 0 : index
    %c0_5 = arith.constant 0 : index
    %11 = vector.load %arg3[%c0_4, %c0_5] : memref<512x128xbf16, #tpu.memory_space<vmem>>, vector<512x128xbf16>
    tpu.vector_store %arg3[%c0_4, %c0_5], %10 {strides = array<i32>} : memref<512x128xbf16, #tpu.memory_space<vmem>>, vector<512x128xbf16>,
    return
  }
  func.func @transform_0(%arg0: i32) -> (i32, i32) {
    %c0_i32 = arith.constant 0 : i32
    %c0_i32_0 = arith.constant 0 : i32
    return %arg0, %c0_i32 : i32, i32
  }
  func.func @transform_1(%arg0: i32) -> (i32, i32) {
    %c0_i32 = arith.constant 0 : i32
    %c0_i32_0 = arith.constant 0 : i32
    %c0_i32_1 = arith.constant 0 : i32
    return %c0_i32, %c0_i32_0 : i32, i32
  }
  func.func @transform_2(%arg0: i32) -> (i32, i32) {
    %c0_i32 = arith.constant 0 : i32
    %c0_i32_0 = arith.constant 0 : i32
    return %arg0, %c0_i32 : i32, i32
  }
}

module attributes {stable_mosaic.version = 11 : i64} {
  func.func @_matmul_stats_kernel(%arg0: i32, %arg1: i32, %arg2: memref<512x36xbf16, #tpu.memory_space<vmem>>, %arg3: memref<36x128xbf16, #tpu.memory_space<vmem>>, %arg4: memref<512x128xbf16, #tpu.memory_space<vmem>>, %arg5: memref<1x2x128xf32, #tpu.memory_space<vmem>>, %arg6: memref<512x128xf32, #tpu.memory_space<vmem>>) attributes {dimension_semantics = [#tpu.dimension_semantics<parallel>, #tpu.dimension_semantics<arbitrary>], iteration_bounds = array<i64: 1, 1>, scalar_prefetch = 0 : i64, scratch_operands = 1 : i64, tpu.core_type = #tpu.core_type<tc>, window_params = [{transform_indices = @transform_0, window_bounds = array<i64: 512, 36>}, {transform_indices = @transform_1, window_bounds = array<i64: 36, 128>}, {transform_indices = @transform_2, window_bounds = array<i64: 512, 128>}, {transform_indices = @transform_3, window_bounds = array<i64: 1, 2, 128>}]} {
    %c0_i32 = arith.constant 0 : i32
    %0 = arith.cmpi eq, %arg1, %c0_i32 : i32
    %1 = arith.extui %0 : i1 to i32
    %c0_i32_0 = arith.constant 0 : i32
    %2 = arith.cmpi ne, %1, %c0_i32_0 : i32
    scf.if %2 {
      %cst_10 = arith.constant 0.000000e+00 : f32
      %12 = vector.broadcast %cst_10 : f32 to vector<512x128xf32>
      %c0_11 = arith.constant 0 : index
      %c0_12 = arith.constant 0 : index
      %13 = vector.load %arg6[%c0_11, %c0_12] : memref<512x128xf32, #tpu.memory_space<vmem>>, vector<512x128xf32>
      tpu.vector_store %arg6[%c0_11, %c0_12], %12 {strides = array<i32>} : memref<512x128xf32, #tpu.memory_space<vmem>>, vector<512x128xf32>,
    } else {
    }
    %c0 = arith.constant 0 : index
    %c0_1 = arith.constant 0 : index
    %3 = vector.load %arg6[%c0, %c0_1] : memref<512x128xf32, #tpu.memory_space<vmem>>, vector<512x128xf32>
    %c0_2 = arith.constant 0 : index
    %c0_3 = arith.constant 0 : index
    %4 = vector.load %arg2[%c0_2, %c0_3] : memref<512x36xbf16, #tpu.memory_space<vmem>>, vector<512x36xbf16>
    %c0_4 = arith.constant 0 : index
    %c0_5 = arith.constant 0 : index
    %5 = vector.load %arg3[%c0_4, %c0_5] : memref<36x128xbf16, #tpu.memory_space<vmem>>, vector<36x128xbf16>
    %cst = arith.constant dense<0.000000e+00> : vector<512x128xf32>
    %6 = tpu.matmul %4, %5, %cst {dimension_numbers = #tpu.dot_dimension_numbers<[1], [0], [0], [1], [0, 0, 1, 1], [], []>} : vector<512x36xbf16>, vector<36x128xbf16>, vector<512x128xf32> -> vector<512x128xf32>
    %7 = arith.addf %3, %6 : vector<512x128xf32>
    %c0_6 = arith.constant 0 : index
    %c0_7 = arith.constant 0 : index
    %8 = vector.load %arg6[%c0_6, %c0_7] : memref<512x128xf32, #tpu.memory_space<vmem>>, vector<512x128xf32>
    tpu.vector_store %arg6[%c0_6, %c0_7], %7 {strides = array<i32>} : memref<512x128xf32, #tpu.memory_space<vmem>>, vector<512x128xf32>,
    %c0_i32_8 = arith.constant 0 : i32
    %9 = arith.cmpi eq, %arg1, %c0_i32_8 : i32
    %10 = arith.extui %9 : i1 to i32
    %c0_i32_9 = arith.constant 0 : i32
    %11 = arith.cmpi ne, %10, %c0_i32_9 : i32
    scf.if %11 {
      %c0_10 = arith.constant 0 : index
      %c0_11 = arith.constant 0 : index
      %12 = vector.load %arg6[%c0_10, %c0_11] : memref<512x128xf32, #tpu.memory_space<vmem>>, vector<512x128xf32>
      %13 = arith.truncf %12 : vector<512x128xf32> to vector<512x128xbf16>
      %c0_12 = arith.constant 0 : index
      %c0_13 = arith.constant 0 : index
      %14 = vector.load %arg4[%c0_12, %c0_13] : memref<512x128xbf16, #tpu.memory_space<vmem>>, vector<512x128xbf16>
      tpu.vector_store %arg4[%c0_12, %c0_13], %13 {strides = array<i32>} : memref<512x128xbf16, #tpu.memory_space<vmem>>, vector<512x128xbf16>,
      %cst_14 = arith.constant dense<0.000000e+00> : vector<128xf32>
      %15 = vector.multi_reduction <add>, %12, %cst_14 [0] : vector<512x128xf32> to vector<128xf32>
      %16 = vector.shape_cast %15 : vector<128xf32> to vector<1x128xf32>
      %c0_15 = arith.constant 0 : index
      %c0_16 = arith.constant 0 : index
      %c0_17 = arith.constant 0 : index
      %17 = vector.load %arg5[%c0_15, %c0_16, %c0_17] : memref<1x2x128xf32, #tpu.memory_space<vmem>>, vector<1x1x128xf32>
      %18 = vector.shape_cast %17 : vector<1x1x128xf32> to vector<1x128xf32>
      %19 = vector.shape_cast %16 : vector<1x128xf32> to vector<1x1x128xf32>
      tpu.vector_store %arg5[%c0_15, %c0_16, %c0_17], %19 {strides = array<i32>} : memref<1x2x128xf32, #tpu.memory_space<vmem>>, vector<1x1x128xf32>,
      %20 = arith.mulf %12, %12 : vector<512x128xf32>
      %cst_18 = arith.constant dense<0.000000e+00> : vector<128xf32>
      %21 = vector.multi_reduction <add>, %20, %cst_18 [0] : vector<512x128xf32> to vector<128xf32>
      %22 = vector.shape_cast %21 : vector<128xf32> to vector<1x128xf32>
      %c0_19 = arith.constant 0 : index
      %c1 = arith.constant 1 : index
      %c0_20 = arith.constant 0 : index
      %23 = vector.load %arg5[%c0_19, %c1, %c0_20] : memref<1x2x128xf32, #tpu.memory_space<vmem>>, vector<1x1x128xf32>
      %24 = vector.shape_cast %23 : vector<1x1x128xf32> to vector<1x128xf32>
      %25 = vector.shape_cast %22 : vector<1x128xf32> to vector<1x1x128xf32>
      tpu.vector_store %arg5[%c0_19, %c1, %c0_20], %25 {strides = array<i32>} : memref<1x2x128xf32, #tpu.memory_space<vmem>>, vector<1x1x128xf32>,
    } else {
    }
    return
  }
  func.func @transform_0(%arg0: i32, %arg1: i32) -> (i32, i32) {
    %c0_i32 = arith.constant 0 : i32
    return %arg0, %arg1 : i32, i32
  }
  func.func @transform_1(%arg0: i32, %arg1: i32) -> (i32, i32) {
    %c0_i32 = arith.constant 0 : i32
    %c0_i32_0 = arith.constant 0 : i32
    return %arg1, %c0_i32 : i32, i32
  }
  func.func @transform_2(%arg0: i32, %arg1: i32) -> (i32, i32) {
    %c0_i32 = arith.constant 0 : i32
    %c0_i32_0 = arith.constant 0 : i32
    return %arg0, %c0_i32 : i32, i32
  }
  func.func @transform_3(%arg0: i32, %arg1: i32) -> (i32, i32, i32) {
    %c0_i32 = arith.constant 0 : i32
    %c0_i32_0 = arith.constant 0 : i32
    %c0_i32_1 = arith.constant 0 : i32
    return %arg0, %c0_i32, %c0_i32_0 : i32, i32, i32
  }
}

module attributes {stable_mosaic.version = 11 : i64} {
  func.func @kernel(%arg0: i32, %arg1: memref<512x128xbf16, #tpu.memory_space<vmem>>, %arg2: memref<2x128xf32, #tpu.memory_space<vmem>>, %arg3: memref<512x128xbf16, #tpu.memory_space<vmem>>, %arg4: memref<512x128xf32, #tpu.memory_space<vmem>>) attributes {dimension_semantics = [#tpu.dimension_semantics<parallel>], iteration_bounds = array<i64: 1>, scalar_prefetch = 0 : i64, scratch_operands = 0 : i64, tpu.core_type = #tpu.core_type<tc>, window_params = [{transform_indices = @transform_0, window_bounds = array<i64: 512, 128>}, {pipeline_mode = #tpu.pipeline_mode<synchronous>, transform_indices = @transform_1, window_bounds = array<i64: 2, 128>}, {transform_indices = @transform_2, window_bounds = array<i64: 512, 128>}, {transform_indices = @transform_3, window_bounds = array<i64: 512, 128>}]} {
    %c0 = arith.constant 0 : index
    %c0_0 = arith.constant 0 : index
    %0 = vector.load %arg1[%c0, %c0_0] : memref<512x128xbf16, #tpu.memory_space<vmem>>, vector<512x128xbf16>
    %1 = arith.extf %0 : vector<512x128xbf16> to vector<512x128xf32>
    %c0_1 = arith.constant 0 : index
    %c0_2 = arith.constant 0 : index
    %2 = vector.load %arg2[%c0_1, %c0_2] : memref<2x128xf32, #tpu.memory_space<vmem>>, vector<1x128xf32>
    %3 = vector.broadcast %2 : vector<1x128xf32> to vector<512x128xf32>
    %4 = arith.mulf %1, %3 : vector<512x128xf32>
    %c1 = arith.constant 1 : index
    %c0_3 = arith.constant 0 : index
    %5 = vector.load %arg2[%c1, %c0_3] : memref<2x128xf32, #tpu.memory_space<vmem>>, vector<1x128xf32>
    %6 = vector.broadcast %5 : vector<1x128xf32> to vector<512x128xf32>
    %7 = arith.addf %4, %6 : vector<512x128xf32>
    %c0_4 = arith.constant 0 : index
    %c0_5 = arith.constant 0 : index
    %8 = vector.load %arg3[%c0_4, %c0_5] : memref<512x128xbf16, #tpu.memory_space<vmem>>, vector<512x128xbf16>
    %9 = arith.extf %8 : vector<512x128xbf16> to vector<512x128xf32>
    %10 = arith.addf %7, %9 : vector<512x128xf32>
    %cst = arith.constant 0.000000e+00 : f32
    %11 = vector.broadcast %cst : f32 to vector<512x128xf32>
    %12 = arith.maximumf %10, %11 : vector<512x128xf32>
    %c0_6 = arith.constant 0 : index
    %c0_7 = arith.constant 0 : index
    %13 = vector.load %arg4[%c0_6, %c0_7] : memref<512x128xf32, #tpu.memory_space<vmem>>, vector<512x128xf32>
    tpu.vector_store %arg4[%c0_6, %c0_7], %12 {strides = array<i32>} : memref<512x128xf32, #tpu.memory_space<vmem>>, vector<512x128xf32>,
    return
  }
  func.func @transform_0(%arg0: i32) -> (i32, i32) {
    %c0_i32 = arith.constant 0 : i32
    %c0_i32_0 = arith.constant 0 : i32
    return %arg0, %c0_i32 : i32, i32
  }
  func.func @transform_1(%arg0: i32) -> (i32, i32) {
    %c0_i32 = arith.constant 0 : i32
    %c0_i32_0 = arith.constant 0 : i32
    %c0_i32_1 = arith.constant 0 : i32
    return %c0_i32, %c0_i32_0 : i32, i32
  }
  func.func @transform_2(%arg0: i32) -> (i32, i32) {
    %c0_i32 = arith.constant 0 : i32
    %c0_i32_0 = arith.constant 0 : i32
    return %arg0, %c0_i32 : i32, i32
  }
  func.func @transform_3(%arg0: i32) -> (i32, i32) {
    %c0_i32 = arith.constant 0 : i32
    %c0_i32_0 = arith.constant 0 : i32
    return %arg0, %c0_i32 : i32, i32
  }
}

</mosaic_0001>

<llo_original>
// kernel: basic_block_enc.5
$region0: #{basic_block_enc.5}
  #allocation0 [shape = 'u32[]', space=smem, size = 0x4, offset = 0x4, fixed_abs, tag = 'smem constant byte address 0x4 - core index']
  #allocation1 [shape = 'u32[72,128]{1,0:T(1,128)}', space=vmem, size = 0x9000, scoped, tag = 'internal scratch']
  %s0 = inlined_call_operand.vmem [shape: bf16[512,128], index: 0, kind: input, shape index: {}, may-alias: {0,2}]
  %s1 = inlined_call_operand.vmem [shape: f32[2,128], index: 1, kind: input, shape index: {}]
  %s2 = inlined_call_operand.vmem [shape: bf16[512,128], index: 2, kind: output, shape index: {}, may-alias: {0,2}]
  %s3 = sld [smem:[#allocation0]]
  $region18: #{basic_block_enc.5} parent=0
    _
  %s5 = ssub.s32 1, %s3
  %s6 = scalar_select 0, %s5, %s3
  // Predicated region
  $region2: #{basic_block_enc.5} parent=0 // pred_check
    _
  $region3: #{basic_block_enc.5} parent=0 // pred_check_branch
    %8 = sbr.rel (0) target = $region5
  $region4: #{basic_block_enc.5} parent=0 // pred_region
    _
  $region5: #{basic_block_enc.5} parent=0 // pred_fallthru
    _
  // Predicated region
  $region6: #{basic_block_enc.5} parent=0 // pred_check
    _
  $region7: #{basic_block_enc.5} parent=0 // pred_check_branch
    %10 = sbr.rel (0) target = $region9
  $region8: #{basic_block_enc.5} parent=0 // pred_region
    _
  $region9: #{basic_block_enc.5} parent=0 // pred_fallthru
    _
  %v11 = vld [vmem:[%s0] sm:$0xf]
  %v12 = vld [vmem:[%s0 + $0x4] sm:$0xf]
  %v13 = vld [vmem:[%s0 + $0x8] sm:$0xf]
  %v14 = vld [vmem:[%s0 + $0xc] sm:$0xf]
  %v15 = vld [vmem:[%s0 + $0x10] sm:$0xf]
  %v16 = vld [vmem:[%s0 + $0x14] sm:$0xf]
  %v17 = vld [vmem:[%s0 + $0x18] sm:$0xf]
  %v18 = vld [vmem:[%s0 + $0x1c] sm:$0xf]
  %v19 = vld [vmem:[%s0 + $0x20] sm:$0xf]
  %v20 = vld [vmem:[%s0 + $0x24] sm:$0xf]
  %v21 = vld [vmem:[%s0 + $0x28] sm:$0xf]
  %v22 = vld [vmem:[%s0 + $0x2c] sm:$0xf]
  %v23 = vld [vmem:[%s0 + $0x30] sm:$0xf]
  %v24 = vld [vmem:[%s0 + $0x34] sm:$0xf]
  %v25 = vld [vmem:[%s0 + $0x38] sm:$0xf]
  %v26 = vld [vmem:[%s0 + $0x3c] sm:$0xf]
  %v27 = vld [vmem:[%s0 + $0x40] sm:$0xf]
  %v28 = vld [vmem:[%s0 + $0x44] sm:$0xf]
  %v29 = vld [vmem:[%s0 + $0x48] sm:$0xf]
  %v30 = vld [vmem:[%s0 + $0x4c] sm:$0xf]
  %v31 = vld [vmem:[%s0 + $0x50] sm:$0xf]
  %v32 = vld [vmem:[%s0 + $0x54] sm:$0xf]
  %v33 = vld [vmem:[%s0 + $0x58] sm:$0xf]
  %v34 = vld [vmem:[%s0 + $0x5c] sm:$0xf]
  %v35 = vld [vmem:[%s0 + $0x60] sm:$0xf]
  %v36 = vld [vmem:[%s0 + $0x64] sm:$0xf]
  %v37 = vld [vmem:[%s0 + $0x68] sm:$0xf]
  %v38 = vld [vmem:[%s0 + $0x6c] sm:$0xf]
  %v39 = vld [vmem:[%s0 + $0x70] sm:$0xf]
  %v40 = vld [vmem:[%s0 + $0x74] sm:$0xf]
  %v41 = vld [vmem:[%s0 + $0x78] sm:$0xf]
  %v42 = vld [vmem:[%s0 + $0x7c] sm:$0xf]
  %v43 = vld [vmem:[%s0 + $0x80] sm:$0xf]
  %v44 = vld [vmem:[%s0 + $0x84] sm:$0xf]
  %v45 = vld [vmem:[%s0 + $0x88] sm:$0xf]
  %v46 = vld [vmem:[%s0 + $0x8c] sm:$0xf]
  %v47 = vld [vmem:[%s0 + $0x90] sm:$0xf]
  %v48 = vld [vmem:[%s0 + $0x94] sm:$0xf]
  %v49 = vld [vmem:[%s0 + $0x98] sm:$0xf]
  %v50 = vld [vmem:[%s0 + $0x9c] sm:$0xf]
  %v51 = vld [vmem:[%s0 + $0xa0] sm:$0xf]
  %v52 = vld [vmem:[%s0 + $0xa4] sm:$0xf]
  %v53 = vld [vmem:[%s0 + $0xa8] sm:$0xf]
  %v54 = vld [vmem:[%s0 + $0xac] sm:$0xf]
  %v55 = vld [vmem:[%s0 + $0xb0] sm:$0xf]
  %v56 = vld [vmem:[%s0 + $0xb4] sm:$0xf]
  %v57 = vld [vmem:[%s0 + $0xb8] sm:$0xf]
  %v58 = vld [vmem:[%s0 + $0xbc] sm:$0xf]
  %v59 = vld [vmem:[%s0 + $0xc0] sm:$0xf]
  %v60 = vld [vmem:[%s0 + $0xc4] sm:$0xf]
  %v61 = vld [vmem:[%s0 + $0xc8] sm:$0xf]
  %v62 = vld [vmem:[%s0 + $0xcc] sm:$0xf]
  %v63 = vld [vmem:[%s0 + $0xd0] sm:$0xf]
  %v64 = vld [vmem:[%s0 + $0xd4] sm:$0xf]
  %v65 = vld [vmem:[%s0 + $0xd8] sm:$0xf]
  %v66 = vld [vmem:[%s0 + $0xdc] sm:$0xf]
  %v67 = vld [vmem:[%s0 + $0xe0] sm:$0xf]
  %v68 = vld [vmem:[%s0 + $0xe4] sm:$0xf]
  %v69 = vld [vmem:[%s0 + $0xe8] sm:$0xf]
  %v70 = vld [vmem:[%s0 + $0xec] sm:$0xf]
  %v71 = vld [vmem:[%s0 + $0xf0] sm:$0xf]
  %v72 = vld [vmem:[%s0 + $0xf4] sm:$0xf]
  %v73 = vld [vmem:[%s0 + $0xf8] sm:$0xf]
  %v74 = vld [vmem:[%s0 + $0xfc] sm:$0xf]
  %v75 = vunpack.c.l.bf16 %v11
  %v76 = vunpack.c.l.bf16 %v12
  %v77 = vunpack.c.l.bf16 %v13
  %v78 = vunpack.c.l.bf16 %v14
  %v79 = vunpack.c.l.bf16 %v15
  %v80 = vunpack.c.l.bf16 %v16
  %v81 = vunpack.c.l.bf16 %v17
  %v82 = vunpack.c.l.bf16 %v18
  %v83 = vunpack.c.l.bf16 %v19
  %v84 = vunpack.c.l.bf16 %v20
  %v85 = vunpack.c.l.bf16 %v21
  %v86 = vunpack.c.l.bf16 %v22
  %v87 = vunpack.c.l.bf16 %v23
  %v88 = vunpack.c.l.bf16 %v24
  %v89 = vunpack.c.l.bf16 %v25
  %v90 = vunpack.c.l.bf16 %v26
  %v91 = vunpack.c.l.bf16 %v27
  %v92 = vunpack.c.l.bf16 %v28
  %v93 = vunpack.c.l.bf16 %v29
  %v94 = vunpack.c.l.bf16 %v30
  %v95 = vunpack.c.l.bf16 %v31
  %v96 = vunpack.c.l.bf16 %v32
  %v97 = vunpack.c.l.bf16 %v33
  %v98 = vunpack.c.l.bf16 %v34
  %v99 = vunpack.c.l.bf16 %v35
  %v100 = vunpack.c.l.bf16 %v36
  %v101 = vunpack.c.l.bf16 %v37
  %v102 = vunpack.c.l.bf16 %v38
  %v103 = vunpack.c.l.bf16 %v39
  %v104 = vunpack.c.l.bf16 %v40
  %v105 = vunpack.c.l.bf16 %v41
  %v106 = vunpack.c.l.bf16 %v42
  %v107 = vunpack.c.l.bf16 %v43
  %v108 = vunpack.c.l.bf16 %v44
  %v109 = vunpack.c.l.bf16 %v45
  %v110 = vunpack.c.l.bf16 %v46
  %v111 = vunpack.c.l.bf16 %v47
  %v112 = vunpack.c.l.bf16 %v48
  %v113 = vunpack.c.l.bf16 %v49
  %v114 = vunpack.c.l.bf16 %v50
  %v115 = vunpack.c.l.bf16 %v51
  %v116 = vunpack.c.l.bf16 %v52
  %v117 = vunpack.c.l.bf16 %v53
  %v118 = vunpack.c.l.bf16 %v54
  %v119 = vunpack.c.l.bf16 %v55
  %v120 = vunpack.c.l.bf16 %v56
  %v121 = vunpack.c.l.bf16 %v57
  %v122 = vunpack.c.l.bf16 %v58
  %v123 = vunpack.c.l.bf16 %v59
  %v124 = vunpack.c.l.bf16 %v60
  %v125 = vunpack.c.l.bf16 %v61
  %v126 = vunpack.c.l.bf16 %v62
  %v127 = vunpack.c.l.bf16 %v63
  %v128 = vunpack.c.l.bf16 %v64
  %v129 = vunpack.c.l.bf16 %v65
  %v130 = vunpack.c.l.bf16 %v66
  %v131 = vunpack.c.l.bf16 %v67
  %v132 = vunpack.c.l.bf16 %v68
  %v133 = vunpack.c.l.bf16 %v69
  %v134 = vunpack.c.l.bf16 %v70
  %v135 = vunpack.c.l.bf16 %v71
  %v136 = vunpack.c.l.bf16 %v72
  %v137 = vunpack.c.l.bf16 %v73
  %v138 = vunpack.c.l.bf16 %v74
  %v139 = vld [vmem:[%s1] sm:$0x1]
  %v140 = vperm.slane %v139, 0
  %v141 = vmul.f32 %v75, %v140
  %v142 = vmul.f32 %v76, %v140
  %v143 = vmul.f32 %v77, %v140
  %v144 = vmul.f32 %v78, %v140
  %v145 = vmul.f32 %v79, %v140
  %v146 = vmul.f32 %v80, %v140
  %v147 = vmul.f32 %v81, %v140
  %v148 = vmul.f32 %v82, %v140
  %v149 = vmul.f32 %v83, %v140
  %v150 = vmul.f32 %v84, %v140
  %v151 = vmul.f32 %v85, %v140
  %v152 = vmul.f32 %v86, %v140
  %v153 = vmul.f32 %v87, %v140
  %v154 = vmul.f32 %v88, %v140
  %v155 = vmul.f32 %v89, %v140
  %v156 = vmul.f32 %v90, %v140
  %v157 = vmul.f32 %v91, %v140
  %v158 = vmul.f32 %v92, %v140
  %v159 = vmul.f32 %v93, %v140
  %v160 = vmul.f32 %v94, %v140
  %v161 = vmul.f32 %v95, %v140
  %v162 = vmul.f32 %v96, %v140
  %v163 = vmul.f32 %v97, %v140
  %v164 = vmul.f32 %v98, %v140
  %v165 = vmul.f32 %v99, %v140
  %v166 = vmul.f32 %v100, %v140
  %v167 = vmul.f32 %v101, %v140
  %v168 = vmul.f32 %v102, %v140
  %v169 = vmul.f32 %v103, %v140
  %v170 = vmul.f32 %v104, %v140
  %v171 = vmul.f32 %v105, %v140
  %v172 = vmul.f32 %v106, %v140
  %v173 = vmul.f32 %v107, %v140
  %v174 = vmul.f32 %v108, %v140
  %v175 = vmul.f32 %v109, %v140
  %v176 = vmul.f32 %v110, %v140
  %v177 = vmul.f32 %v111, %v140
  %v178 = vmul.f32 %v112, %v140
  %v179 = vmul.f32 %v113, %v140
  %v180 = vmul.f32 %v114, %v140
  %v181 = vmul.f32 %v115, %v140
  %v182 = vmul.f32 %v116, %v140
  %v183 = vmul.f32 %v117, %v140
  %v184 = vmul.f32 %v118, %v140
  %v185 = vmul.f32 %v119, %v140
  %v186 = vmul.f32 %v120, %v140
  %v187 = vmul.f32 %v121, %v140
  %v188 = vmul.f32 %v122, %v140
  %v189 = vmul.f32 %v123, %v140
  %v190 = vmul.f32 %v124, %v140
  %v191 = vmul.f32 %v125, %v140
  %v192 = vmul.f32 %v126, %v140
  %v193 = vmul.f32 %v127, %v140
  %v194 = vmul.f32 %v128, %v140
  %v195 = vmul.f32 %v129, %v140
  %v196 = vmul.f32 %v130, %v140
  %v197 = vmul.f32 %v131, %v140
  %v198 = vmul.f32 %v132, %v140
  %v199 = vmul.f32 %v133, %v140
  %v200 = vmul.f32 %v134, %v140
  %v201 = vmul.f32 %v135, %v140
  %v202 = vmul.f32 %v136, %v140
  %v203 = vmul.f32 %v137, %v140
  %v204 = vmul.f32 %v138, %v140
  %v205 = vld [vmem:[%s1 + $0x1] sm:$0x1]
  %v206 = vperm.slane %v205, 0
  %v207 = vadd.f32 %v141, %v206
  %v208 = vadd.f32 %v142, %v206
  %v209 = vadd.f32 %v143, %v206
  %v210 = vadd.f32 %v144, %v206
  %v211 = vadd.f32 %v145, %v206
  %v212 = vadd.f32 %v146, %v206
  %v213 = vadd.f32 %v147, %v206
  %v214 = vadd.f32 %v148, %v206
  %v215 = vadd.f32 %v149, %v206
  %v216 = vadd.f32 %v150, %v206
  %v217 = vadd.f32 %v151, %v206
  %v218 = vadd.f32 %v152, %v206
  %v219 = vadd.f32 %v153, %v206
  %v220 = vadd.f32 %v154, %v206
  %v221 = vadd.f32 %v155, %v206
  %v222 = vadd.f32 %v156, %v206
  %v223 = vadd.f32 %v157, %v206
  %v224 = vadd.f32 %v158, %v206
  %v225 = vadd.f32 %v159, %v206
  %v226 = vadd.f32 %v160, %v206
  %v227 = vadd.f32 %v161, %v206
  %v228 = vadd.f32 %v162, %v206
  %v229 = vadd.f32 %v163, %v206
  %v230 = vadd.f32 %v164, %v206
  %v231 = vadd.f32 %v165, %v206
  %v232 = vadd.f32 %v166, %v206
  %v233 = vadd.f32 %v167, %v206
  %v234 = vadd.f32 %v168, %v206
  %v235 = vadd.f32 %v169, %v206
  %v236 = vadd.f32 %v170, %v206
  %v237 = vadd.f32 %v171, %v206
  %v238 = vadd.f32 %v172, %v206
  %v239 = vadd.f32 %v173, %v206
  %v240 = vadd.f32 %v174, %v206
  %v241 = vadd.f32 %v175, %v206
  %v242 = vadd.f32 %v176, %v206
  %v243 = vadd.f32 %v177, %v206
  %v244 = vadd.f32 %v178, %v206
  %v245 = vadd.f32 %v179, %v206
  %v246 = vadd.f32 %v180, %v206
  %v247 = vadd.f32 %v181, %v206
  %v248 = vadd.f32 %v182, %v206
  %v249 = vadd.f32 %v183, %v206
  %v250 = vadd.f32 %v184, %v206
  %v251 = vadd.f32 %v185, %v206
  %v252 = vadd.f32 %v186, %v206
  %v253 = vadd.f32 %v187, %v206
  %v254 = vadd.f32 %v188, %v206
  %v255 = vadd.f32 %v189, %v206
  %v256 = vadd.f32 %v190, %v206
  %v257 = vadd.f32 %v191, %v206
  %v258 = vadd.f32 %v192, %v206
  %v259 = vadd.f32 %v193, %v206
  %v260 = vadd.f32 %v194, %v206
  %v261 = vadd.f32 %v195, %v206
  %v262 = vadd.f32 %v196, %v206
  %v263 = vadd.f32 %v197, %v206
  %v264 = vadd.f32 %v198, %v206
  %v265 = vadd.f32 %v199, %v206
  %v266 = vadd.f32 %v200, %v206
  %v267 = vadd.f32 %v201, %v206
  %v268 = vadd.f32 %v202, %v206
  %v269 = vadd.f32 %v203, %v206
  %v270 = vadd.f32 %v204, %v206
  %v271 = vmax.f32 %v207, 0.0
  %v272 = vmax.f32 %v208, 0.0
  %v273 = vmax.f32 %v209, 0.0
  %v274 = vmax.f32 %v210, 0.0
  %v275 = vmax.f32 %v211, 0.0
  %v276 = vmax.f32 %v212, 0.0
  %v277 = vmax.f32 %v213, 0.0
  %v278 = vmax.f32 %v214, 0.0
  %v279 = vmax.f32 %v215, 0.0
  %v280 = vmax.f32 %v216, 0.0
  %v281 = vmax.f32 %v217, 0.0
  %v282 = vmax.f32 %v218, 0.0
  %v283 = vmax.f32 %v219, 0.0
  %v284 = vmax.f32 %v220, 0.0
  %v285 = vmax.f32 %v221, 0.0
  %v286 = vmax.f32 %v222, 0.0
  %v287 = vmax.f32 %v223, 0.0
  %v288 = vmax.f32 %v224, 0.0
  %v289 = vmax.f32 %v225, 0.0
  %v290 = vmax.f32 %v226, 0.0
  %v291 = vmax.f32 %v227, 0.0
  %v292 = vmax.f32 %v228, 0.0
  %v293 = vmax.f32 %v229, 0.0
  %v294 = vmax.f32 %v230, 0.0
  %v295 = vmax.f32 %v231, 0.0
  %v296 = vmax.f32 %v232, 0.0
  %v297 = vmax.f32 %v233, 0.0
  %v298 = vmax.f32 %v234, 0.0
  %v299 = vmax.f32 %v235, 0.0
  %v300 = vmax.f32 %v236, 0.0
  %v301 = vmax.f32 %v237, 0.0
  %v302 = vmax.f32 %v238, 0.0
  %v303 = vmax.f32 %v239, 0.0
  %v304 = vmax.f32 %v240, 0.0
  %v305 = vmax.f32 %v241, 0.0
  %v306 = vmax.f32 %v242, 0.0
  %v307 = vmax.f32 %v243, 0.0
  %v308 = vmax.f32 %v244, 0.0
  %v309 = vmax.f32 %v245, 0.0
  %v310 = vmax.f32 %v246, 0.0
  %v311 = vmax.f32 %v247, 0.0
  %v312 = vmax.f32 %v248, 0.0
  %v313 = vmax.f32 %v249, 0.0
  %v314 = vmax.f32 %v250, 0.0
  %v315 = vmax.f32 %v251, 0.0
  %v316 = vmax.f32 %v252, 0.0
  %v317 = vmax.f32 %v253, 0.0
  %v318 = vmax.f32 %v254, 0.0
  %v319 = vmax.f32 %v255, 0.0
  %v320 = vmax.f32 %v256, 0.0
  %v321 = vmax.f32 %v257, 0.0
  %v322 = vmax.f32 %v258, 0.0
  %v323 = vmax.f32 %v259, 0.0
  %v324 = vmax.f32 %v260, 0.0
  %v325 = vmax.f32 %v261, 0.0
  %v326 = vmax.f32 %v262, 0.0
  %v327 = vmax.f32 %v263, 0.0
  %v328 = vmax.f32 %v264, 0.0
  %v329 = vmax.f32 %v265, 0.0
  %v330 = vmax.f32 %v266, 0.0
  %v331 = vmax.f32 %v267, 0.0
  %v332 = vmax.f32 %v268, 0.0
  %v333 = vmax.f32 %v269, 0.0
  %v334 = vmax.f32 %v270, 0.0
  %v335 = vpack.c.bf16 %v271, %v271
  %v336 = vpack.c.bf16 %v272, %v272
  %v337 = vpack.c.bf16 %v273, %v273
  %v338 = vpack.c.bf16 %v274, %v274
  %v339 = vpack.c.bf16 %v275, %v275
  %v340 = vpack.c.bf16 %v276, %v276
  %v341 = vpack.c.bf16 %v277, %v277
  %v342 = vpack.c.bf16 %v278, %v278
  %v343 = vpack.c.bf16 %v279, %v279
  %v344 = vpack.c.bf16 %v280, %v280
  %v345 = vpack.c.bf16 %v281, %v281
  %v346 = vpack.c.bf16 %v282, %v282
  %v347 = vpack.c.bf16 %v283, %v283
  %v348 = vpack.c.bf16 %v284, %v284
  %v349 = vpack.c.bf16 %v285, %v285
  %v350 = vpack.c.bf16 %v286, %v286
  %v351 = vpack.c.bf16 %v287, %v287
  %v352 = vpack.c.bf16 %v288, %v288
  %v353 = vpack.c.bf16 %v289, %v289
  %v354 = vpack.c.bf16 %v290, %v290
  %v355 = vpack.c.bf16 %v291, %v291
  %v356 = vpack.c.bf16 %v292, %v292
  %v357 = vpack.c.bf16 %v293, %v293
  %v358 = vpack.c.bf16 %v294, %v294
  %v359 = vpack.c.bf16 %v295, %v295
  %v360 = vpack.c.bf16 %v296, %v296
  %v361 = vpack.c.bf16 %v297, %v297
  %v362 = vpack.c.bf16 %v298, %v298
  %v363 = vpack.c.bf16 %v299, %v299
  %v364 = vpack.c.bf16 %v300, %v300
  %v365 = vpack.c.bf16 %v301, %v301
  %v366 = vpack.c.bf16 %v302, %v302
  %v367 = vpack.c.bf16 %v303, %v303
  %v368 = vpack.c.bf16 %v304, %v304
  %v369 = vpack.c.bf16 %v305, %v305
  %v370 = vpack.c.bf16 %v306, %v306
  %v371 = vpack.c.bf16 %v307, %v307
  %v372 = vpack.c.bf16 %v308, %v308
  %v373 = vpack.c.bf16 %v309, %v309
  %v374 = vpack.c.bf16 %v310, %v310
  %v375 = vpack.c.bf16 %v311, %v311
  %v376 = vpack.c.bf16 %v312, %v312
  %v377 = vpack.c.bf16 %v313, %v313
  %v378 = vpack.c.bf16 %v314, %v314
  %v379 = vpack.c.bf16 %v315, %v315
  %v380 = vpack.c.bf16 %v316, %v316
  %v381 = vpack.c.bf16 %v317, %v317
  %v382 = vpack.c.bf16 %v318, %v318
  %v383 = vpack.c.bf16 %v319, %v319
  %v384 = vpack.c.bf16 %v320, %v320
  %v385 = vpack.c.bf16 %v321, %v321
  %v386 = vpack.c.bf16 %v322, %v322
  %v387 = vpack.c.bf16 %v323, %v323
  %v388 = vpack.c.bf16 %v324, %v324
  %v389 = vpack.c.bf16 %v325, %v325
  %v390 = vpack.c.bf16 %v326, %v326
  %v391 = vpack.c.bf16 %v327, %v327
  %v392 = vpack.c.bf16 %v328, %v328
  %v393 = vpack.c.bf16 %v329, %v329
  %v394 = vpack.c.bf16 %v330, %v330
  %v395 = vpack.c.bf16 %v331, %v331
  %v396 = vpack.c.bf16 %v332, %v332
  %v397 = vpack.c.bf16 %v333, %v333
  %v398 = vpack.c.bf16 %v334, %v334
  %399 = vst [vmem:[%s2] sm:$0xf] %v335
  %400 = vst [vmem:[%s2 + $0x4] sm:$0xf] %v336
  %401 = vst [vmem:[%s2 + $0x8] sm:$0xf] %v337
  %402 = vst [vmem:[%s2 + $0xc] sm:$0xf] %v338
  %403 = vst [vmem:[%s2 + $0x10] sm:$0xf] %v339
  %404 = vst [vmem:[%s2 + $0x14] sm:$0xf] %v340
  %405 = vst [vmem:[%s2 + $0x18] sm:$0xf] %v341
  %406 = vst [vmem:[%s2 + $0x1c] sm:$0xf] %v342
  %407 = vst [vmem:[%s2 + $0x20] sm:$0xf] %v343
  %408 = vst [vmem:[%s2 + $0x24] sm:$0xf] %v344
  %409 = vst [vmem:[%s2 + $0x28] sm:$0xf] %v345
  %410 = vst [vmem:[%s2 + $0x2c] sm:$0xf] %v346
  %411 = vst [vmem:[%s2 + $0x30] sm:$0xf] %v347
  %412 = vst [vmem:[%s2 + $0x34] sm:$0xf] %v348
  %413 = vst [vmem:[%s2 + $0x38] sm:$0xf] %v349
  %414 = vst [vmem:[%s2 + $0x3c] sm:$0xf] %v350
  %415 = vst [vmem:[%s2 + $0x40] sm:$0xf] %v351
  %416 = vst [vmem:[%s2 + $0x44] sm:$0xf] %v352
  %417 = vst [vmem:[%s2 + $0x48] sm:$0xf] %v353
  %418 = vst [vmem:[%s2 + $0x4c] sm:$0xf] %v354
  %419 = vst [vmem:[%s2 + $0x50] sm:$0xf] %v355
  %420 = vst [vmem:[%s2 + $0x54] sm:$0xf] %v356
  %421 = vst [vmem:[%s2 + $0x58] sm:$0xf] %v357
  %422 = vst [vmem:[%s2 + $0x5c] sm:$0xf] %v358
  %423 = vst [vmem:[%s2 + $0x60] sm:$0xf] %v359
  %424 = vst [vmem:[%s2 + $0x64] sm:$0xf] %v360
  %425 = vst [vmem:[%s2 + $0x68] sm:$0xf] %v361
  %426 = vst [vmem:[%s2 + $0x6c] sm:$0xf] %v362
  %427 = vst [vmem:[%s2 + $0x70] sm:$0xf] %v363
  %428 = vst [vmem:[%s2 + $0x74] sm:$0xf] %v364
  %429 = vst [vmem:[%s2 + $0x78] sm:$0xf] %v365
  %430 = vst [vmem:[%s2 + $0x7c] sm:$0xf] %v366
  %431 = vst [vmem:[%s2 + $0x80] sm:$0xf] %v367
  %432 = vst [vmem:[%s2 + $0x84] sm:$0xf] %v368
  %433 = vst [vmem:[%s2 + $0x88] sm:$0xf] %v369
  %434 = vst [vmem:[%s2 + $0x8c] sm:$0xf] %v370
  %435 = vst [vmem:[%s2 + $0x90] sm:$0xf] %v371
  %436 = vst [vmem:[%s2 + $0x94] sm:$0xf] %v372
  %437 = vst [vmem:[%s2 + $0x98] sm:$0xf] %v373
  %438 = vst [vmem:[%s2 + $0x9c] sm:$0xf] %v374
  %439 = vst [vmem:[%s2 + $0xa0] sm:$0xf] %v375
  %440 = vst [vmem:[%s2 + $0xa4] sm:$0xf] %v376
  %441 = vst [vmem:[%s2 + $0xa8] sm:$0xf] %v377
  %442 = vst [vmem:[%s2 + $0xac] sm:$0xf] %v378
  %443 = vst [vmem:[%s2 + $0xb0] sm:$0xf] %v379
  %444 = vst [vmem:[%s2 + $0xb4] sm:$0xf] %v380
  %445 = vst [vmem:[%s2 + $0xb8] sm:$0xf] %v381
  %446 = vst [vmem:[%s2 + $0xbc] sm:$0xf] %v382
  %447 = vst [vmem:[%s2 + $0xc0] sm:$0xf] %v383
  %448 = vst [vmem:[%s2 + $0xc4] sm:$0xf] %v384
  %449 = vst [vmem:[%s2 + $0xc8] sm:$0xf] %v385
  %450 = vst [vmem:[%s2 + $0xcc] sm:$0xf] %v386
  %451 = vst [vmem:[%s2 + $0xd0] sm:$0xf] %v387
  %452 = vst [vmem:[%s2 + $0xd4] sm:$0xf] %v388
  %453 = vst [vmem:[%s2 + $0xd8] sm:$0xf] %v389
  %454 = vst [vmem:[%s2 + $0xdc] sm:$0xf] %v390
  %455 = vst [vmem:[%s2 + $0xe0] sm:$0xf] %v391
  %456 = vst [vmem:[%s2 + $0xe4] sm:$0xf] %v392
  %457 = vst [vmem:[%s2 + $0xe8] sm:$0xf] %v393
  %458 = vst [vmem:[%s2 + $0xec] sm:$0xf] %v394
  %459 = vst [vmem:[%s2 + $0xf0] sm:$0xf] %v395
  %460 = vst [vmem:[%s2 + $0xf4] sm:$0xf] %v396
  %461 = vst [vmem:[%s2 + $0xf8] sm:$0xf] %v397
  %462 = vst [vmem:[%s2 + $0xfc] sm:$0xf] %v398
  // Predicated region
  $region10: #{basic_block_enc.5} parent=0 // pred_check
    _
  $region11: #{basic_block_enc.5} parent=0 // pred_check_branch
    %464 = sbr.rel (0) target = $region13
  $region12: #{basic_block_enc.5} parent=0 // pred_region
    _
  $region13: #{basic_block_enc.5} parent=0 // pred_fallthru
    _
  // Predicated region
  $region14: #{basic_block_enc.5} parent=0 // pred_check
    _
  $region15: #{basic_block_enc.5} parent=0 // pred_check_branch
    %466 = sbr.rel (0) target = $region17
  $region16: #{basic_block_enc.5} parent=0 // pred_region
    _
  $region17: #{basic_block_enc.5} parent=0 // pred_fallthru
    _

// kernel: basic_block_enc.4
$region0: #{basic_block_enc.4}
  #allocation0 [shape = 'u32[]', space=smem, size = 0x4, offset = 0x4, fixed_abs, tag = 'smem constant byte address 0x4 - core index']
  #allocation1 [shape = 'u32[72,128]{1,0:T(1,128)}', space=vmem, size = 0x9000, scoped, tag = 'internal scratch']
  #allocation2 [shape = 'f32[512,128]{1,0:T(8,128)}', space=vmem, size = 0x40000, scoped, tag = 'scratch operand']
  %s0 = inlined_call_operand.vmem [shape: bf16[512,36], index: 0, kind: input, shape index: {}]
  %s1 = inlined_call_operand.vmem [shape: bf16[36,128], index: 1, kind: input, shape index: {}]
  %s2 = inlined_call_operand.vmem [shape: bf16[512,128], index: 2, kind: output, shape index: {0}]
  %s3 = inlined_call_operand.vmem [shape: f32[1,2,128], index: 3, kind: output, shape index: {1}]
  %4 = xla_tuple %s2, %s3
  %s5 = sld [smem:[#allocation0]]
  $region34: #{basic_block_enc.4} parent=0
    _
  %s7 = ssub.s32 1, %s5
  %s8 = scalar_select 0, %s7, %s5
  // Predicated region
  $region2: #{basic_block_enc.4} parent=0 // pred_check
    _
  $region3: #{basic_block_enc.4} parent=0 // pred_check_branch
    %10 = sbr.rel (0) target = $region5
  $region4: #{basic_block_enc.4} parent=0 // pred_region
    _
  $region5: #{basic_block_enc.4} parent=0 // pred_fallthru
    _
  // Predicated region
  $region6: #{basic_block_enc.4} parent=0 // pred_check
    _
  $region7: #{basic_block_enc.4} parent=0 // pred_check_branch
    %12 = sbr.rel (0) target = $region9
  $region8: #{basic_block_enc.4} parent=0 // pred_region
    _
  $region9: #{basic_block_enc.4} parent=0 // pred_fallthru
    _
  %p14 = scmp.eq.s32.totalorder 0, 0
  // Predicated region
  $region10: #{basic_block_enc.4} parent=0 // pred_check
    %p15 = pneg %p14
  $region11: #{basic_block_enc.4} parent=0 // pred_check_branch
    %17 = sbr.rel (%p15) target = $region13
  $region12: #{basic_block_enc.4} parent=0 // pred_region
    %18 = vst [vmem:[#allocation2] sm:$0xff] 0.0
    %19 = vst [vmem:[#allocation2 + $0x8] sm:$0xff] 0.0
    %20 = vst [vmem:[#allocation2 + $0x10] sm:$0xff] 0.0
    %21 = vst [vmem:[#allocation2 + $0x18] sm:$0xff] 0.0
    %22 = vst [vmem:[#allocation2 + $0x20] sm:$0xff] 0.0
    %23 = vst [vmem:[#allocation2 + $0x28] sm:$0xff] 0.0
    %24 = vst [vmem:[#allocation2 + $0x30] sm:$0xff] 0.0
    %25 = vst [vmem:[#allocation2 + $0x38] sm:$0xff] 0.0
    %26 = vst [vmem:[#allocation2 + $0x40] sm:$0xff] 0.0
    %27 = vst [vmem:[#allocation2 + $0x48] sm:$0xff] 0.0
    %28 = vst [vmem:[#allocation2 + $0x50] sm:$0xff] 0.0
    %29 = vst [vmem:[#allocation2 + $0x58] sm:$0xff] 0.0
    %30 = vst [vmem:[#allocation2 + $0x60] sm:$0xff] 0.0
    %31 = vst [vmem:[#allocation2 + $0x68] sm:$0xff] 0.0
    %32 = vst [vmem:[#allocation2 + $0x70] sm:$0xff] 0.0
    %33 = vst [vmem:[#allocation2 + $0x78] sm:$0xff] 0.0
    %34 = vst [vmem:[#allocation2 + $0x80] sm:$0xff] 0.0
    %35 = vst [vmem:[#allocation2 + $0x88] sm:$0xff] 0.0
    %36 = vst [vmem:[#allocation2 + $0x90] sm:$0xff] 0.0
    %37 = vst [vmem:[#allocation2 + $0x98] sm:$0xff] 0.0
    %38 = vst [vmem:[#allocation2 + $0xa0] sm:$0xff] 0.0
    %39 = vst [vmem:[#allocation2 + $0xa8] sm:$0xff] 0.0
    %40 = vst [vmem:[#allocation2 + $0xb0] sm:$0xff] 0.0
    %41 = vst [vmem:[#allocation2 + $0xb8] sm:$0xff] 0.0
    %42 = vst [vmem:[#allocation2 + $0xc0] sm:$0xff] 0.0
    %43 = vst [vmem:[#allocation2 + $0xc8] sm:$0xff] 0.0
    %44 = vst [vmem:[#allocation2 + $0xd0] sm:$0xff] 0.0
    %45 = vst [vmem:[#allocation2 + $0xd8] sm:$0xff] 0.0
    %46 = vst [vmem:[#allocation2 + $0xe0] sm:$0xff] 0.0
    %47 = vst [vmem:[#allocation2 + $0xe8] sm:$0xff] 0.0
    %48 = vst [vmem:[#allocation2 + $0xf0] sm:$0xff] 0.0
    %49 = vst [vmem:[#allocation2 + $0xf8] sm:$0xff] 0.0
    %50 = vst [vmem:[#allocation2 + $0x100] sm:$0xff] 0.0
    %51 = vst [vmem:[#allocation2 + $0x108] sm:$0xff] 0.0
    %52 = vst [vmem:[#allocation2 + $0x110] sm:$0xff] 0.0
    %53 = vst [vmem:[#allocation2 + $0x118] sm:$0xff] 0.0
    %54 = vst [vmem:[#allocation2 + $0x120] sm:$0xff] 0.0
    %55 = vst [vmem:[#allocation2 + $0x128] sm:$0xff] 0.0
    %56 = vst [vmem:[#allocation2 + $0x130] sm:$0xff] 0.0
    %57 = vst [vmem:[#allocation2 + $0x138] sm:$0xff] 0.0
    %58 = vst [vmem:[#allocation2 + $0x140] sm:$0xff] 0.0
    %59 = vst [vmem:[#allocation2 + $0x148] sm:$0xff] 0.0
    %60 = vst [vmem:[#allocation2 + $0x150] sm:$0xff] 0.0
    %61 = vst [vmem:[#allocation2 + $0x158] sm:$0xff] 0.0
    %62 = vst [vmem:[#allocation2 + $0x160] sm:$0xff] 0.0
    %63 = vst [vmem:[#allocation2 + $0x168] sm:$0xff] 0.0
    %64 = vst [vmem:[#allocation2 + $0x170] sm:$0xff] 0.0
    %65 = vst [vmem:[#allocation2 + $0x178] sm:$0xff] 0.0
    %66 = vst [vmem:[#allocation2 + $0x180] sm:$0xff] 0.0
    %67 = vst [vmem:[#allocation2 + $0x188] sm:$0xff] 0.0
    %68 = vst [vmem:[#allocation2 + $0x190] sm:$0xff] 0.0
    %69 = vst [vmem:[#allocation2 + $0x198] sm:$0xff] 0.0
    %70 = vst [vmem:[#allocation2 + $0x1a0] sm:$0xff] 0.0
    %71 = vst [vmem:[#allocation2 + $0x1a8] sm:$0xff] 0.0
    %72 = vst [vmem:[#allocation2 + $0x1b0] sm:$0xff] 0.0
    %73 = vst [vmem:[#allocation2 + $0x1b8] sm:$0xff] 0.0
    %74 = vst [vmem:[#allocation2 + $0x1c0] sm:$0xff] 0.0
    %75 = vst [vmem:[#allocation2 + $0x1c8] sm:$0xff] 0.0
    %76 = vst [vmem:[#allocation2 + $0x1d0] sm:$0xff] 0.0
    %77 = vst [vmem:[#allocation2 + $0x1d8] sm:$0xff] 0.0
    %78 = vst [vmem:[#allocation2 + $0x1e0] sm:$0xff] 0.0
    %79 = vst [vmem:[#allocation2 + $0x1e8] sm:$0xff] 0.0
    %80 = vst [vmem:[#allocation2 + $0x1f0] sm:$0xff] 0.0
    %81 = vst [vmem:[#allocation2 + $0x1f8] sm:$0xff] 0.0
  $region13: #{basic_block_enc.4} parent=0 // pred_fallthru
    _
  %v82 = vld [vmem:[#allocation2] sm:$0xff]
  %v83 = vld [vmem:[#allocation2 + $0x8] sm:$0xff]
  %v84 = vld [vmem:[#allocation2 + $0x10] sm:$0xff]
  %v85 = vld [vmem:[#allocation2 + $0x18] sm:$0xff]
  %v86 = vld [vmem:[#allocation2 + $0x20] sm:$0xff]
  %v87 = vld [vmem:[#allocation2 + $0x28] sm:$0xff]
  %v88 = vld [vmem:[#allocation2 + $0x30] sm:$0xff]
  %v89 = vld [vmem:[#allocation2 + $0x38] sm:$0xff]
  %v90 = vld [vmem:[#allocation2 + $0x40] sm:$0xff]
  %v91 = vld [vmem:[#allocation2 + $0x48] sm:$0xff]
  %v92 = vld [vmem:[#allocation2 + $0x50] sm:$0xff]
  %v93 = vld [vmem:[#allocation2 + $0x58] sm:$0xff]
  %v94 = vld [vmem:[#allocation2 + $0x60] sm:$0xff]
  %v95 = vld [vmem:[#allocation2 + $0x68] sm:$0xff]
  %v96 = vld [vmem:[#allocation2 + $0x70] sm:$0xff]
  %v97 = vld [vmem:[#allocation2 + $0x78] sm:$0xff]
  %v98 = vld [vmem:[#allocation2 + $0x80] sm:$0xff]
  %v99 = vld [vmem:[#allocation2 + $0x88] sm:$0xff]
  %v100 = vld [vmem:[#allocation2 + $0x90] sm:$0xff]
  %v101 = vld [vmem:[#allocation2 + $0x98] sm:$0xff]
  %v102 = vld [vmem:[#allocation2 + $0xa0] sm:$0xff]
  %v103 = vld [vmem:[#allocation2 + $0xa8] sm:$0xff]
  %v104 = vld [vmem:[#allocation2 + $0xb0] sm:$0xff]
  %v105 = vld [vmem:[#allocation2 + $0xb8] sm:$0xff]
  %v106 = vld [vmem:[#allocation2 + $0xc0] sm:$0xff]
  %v107 = vld [vmem:[#allocation2 + $0xc8] sm:$0xff]
  %v108 = vld [vmem:[#allocation2 + $0xd0] sm:$0xff]
  %v109 = vld [vmem:[#allocation2 + $0xd8] sm:$0xff]
  %v110 = vld [vmem:[#allocation2 + $0xe0] sm:$0xff]
  %v111 = vld [vmem:[#allocation2 + $0xe8] sm:$0xff]
  %v112 = vld [vmem:[#allocation2 + $0xf0] sm:$0xff]
  %v113 = vld [vmem:[#allocation2 + $0xf8] sm:$0xff]
  %v114 = vld [vmem:[#allocation2 + $0x100] sm:$0xff]
  %v115 = vld [vmem:[#allocation2 + $0x108] sm:$0xff]
  %v116 = vld [vmem:[#allocation2 + $0x110] sm:$0xff]
  %v117 = vld [vmem:[#allocation2 + $0x118] sm:$0xff]
  %v118 = vld [vmem:[#allocation2 + $0x120] sm:$0xff]
  %v119 = vld [vmem:[#allocation2 + $0x128] sm:$0xff]
  %v120 = vld [vmem:[#allocation2 + $0x130] sm:$0xff]
  %v121 = vld [vmem:[#allocation2 + $0x138] sm:$0xff]
  %v122 = vld [vmem:[#allocation2 + $0x140] sm:$0xff]
  %v123 = vld [vmem:[#allocation2 + $0x148] sm:$0xff]
  %v124 = vld [vmem:[#allocation2 + $0x150] sm:$0xff]
  %v125 = vld [vmem:[#allocation2 + $0x158] sm:$0xff]
  %v126 = vld [vmem:[#allocation2 + $0x160] sm:$0xff]
  %v127 = vld [vmem:[#allocation2 + $0x168] sm:$0xff]
  %v128 = vld [vmem:[#allocation2 + $0x170] sm:$0xff]
  %v129 = vld [vmem:[#allocation2 + $0x178] sm:$0xff]
  %v130 = vld [vmem:[#allocation2 + $0x180] sm:$0xff]
  %v131 = vld [vmem:[#allocation2 + $0x188] sm:$0xff]
  %v132 = vld [vmem:[#allocation2 + $0x190] sm:$0xff]
  %v133 = vld [vmem:[#allocation2 + $0x198] sm:$0xff]
  %v134 = vld [vmem:[#allocation2 + $0x1a0] sm:$0xff]
  %v135 = vld [vmem:[#allocation2 + $0x1a8] sm:$0xff]
  %v136 = vld [vmem:[#allocation2 + $0x1b0] sm:$0xff]
  %v137 = vld [vmem:[#allocation2 + $0x1b8] sm:$0xff]
  %v138 = vld [vmem:[#allocation2 + $0x1c0] sm:$0xff]
  %v139 = vld [vmem:[#allocation2 + $0x1c8] sm:$0xff]
  %v140 = vld [vmem:[#allocation2 + $0x1d0] sm:$0xff]
  %v141 = vld [vmem:[#allocation2 + $0x1d8] sm:$0xff]
  %v142 = vld [vmem:[#allocation2 + $0x1e0] sm:$0xff]
  %v143 = vld [vmem:[#allocation2 + $0x1e8] sm:$0xff]
  %v144 = vld [vmem:[#allocation2 + $0x1f0] sm:$0xff]
  %v145 = vld [vmem:[#allocation2 + $0x1f8] sm:$0xff]
  %v146 = vld [vmem:[%s0] sm:$0xf]
  %v147 = vld [vmem:[%s0 + $0x4] sm:$0xf]
  %v148 = vld [vmem:[%s0 + $0x8] sm:$0xf]
  %v149 = vld [vmem:[%s0 + $0xc] sm:$0xf]
  %v150 = vld [vmem:[%s0 + $0x10] sm:$0xf]
  %v151 = vld [vmem:[%s0 + $0x14] sm:$0xf]
  %v152 = vld [vmem:[%s0 + $0x18] sm:$0xf]
  %v153 = vld [vmem:[%s0 + $0x1c] sm:$0xf]
  %v154 = vld [vmem:[%s0 + $0x20] sm:$0xf]
  %v155 = vld [vmem:[%s0 + $0x24] sm:$0xf]
  %v156 = vld [vmem:[%s0 + $0x28] sm:$0xf]
  %v157 = vld [vmem:[%s0 + $0x2c] sm:$0xf]
  %v158 = vld [vmem:[%s0 + $0x30] sm:$0xf]
  %v159 = vld [vmem:[%s0 + $0x34] sm:$0xf]
  %v160 = vld [vmem:[%s0 + $0x38] sm:$0xf]
  %v161 = vld [vmem:[%s0 + $0x3c] sm:$0xf]
  %v162 = vld [vmem:[%s0 + $0x40] sm:$0xf]
  %v163 = vld [vmem:[%s0 + $0x44] sm:$0xf]
  %v164 = vld [vmem:[%s0 + $0x48] sm:$0xf]
  %v165 = vld [vmem:[%s0 + $0x4c] sm:$0xf]
  %v166 = vld [vmem:[%s0 + $0x50] sm:$0xf]
  %v167 = vld [vmem:[%s0 + $0x54] sm:$0xf]
  %v168 = vld [vmem:[%s0 + $0x58] sm:$0xf]
  %v169 = vld [vmem:[%s0 + $0x5c] sm:$0xf]
  %v170 = vld [vmem:[%s0 + $0x60] sm:$0xf]
  %v171 = vld [vmem:[%s0 + $0x64] sm:$0xf]
  %v172 = vld [vmem:[%s0 + $0x68] sm:$0xf]
  %v173 = vld [vmem:[%s0 + $0x6c] sm:$0xf]
  %v174 = vld [vmem:[%s0 + $0x70] sm:$0xf]
  %v175 = vld [vmem:[%s0 + $0x74] sm:$0xf]
  %v176 = vld [vmem:[%s0 + $0x78] sm:$0xf]
  %v177 = vld [vmem:[%s0 + $0x7c] sm:$0xf]
  %v178 = vld [vmem:[%s0 + $0x80] sm:$0xf]
  %v179 = vld [vmem:[%s0 + $0x84] sm:$0xf]
  %v180 = vld [vmem:[%s0 + $0x88] sm:$0xf]
  %v181 = vld [vmem:[%s0 + $0x8c] sm:$0xf]
  %v182 = vld [vmem:[%s0 + $0x90] sm:$0xf]
  %v183 = vld [vmem:[%s0 + $0x94] sm:$0xf]
  %v184 = vld [vmem:[%s0 + $0x98] sm:$0xf]
  %v185 = vld [vmem:[%s0 + $0x9c] sm:$0xf]
  %v186 = vld [vmem:[%s0 + $0xa0] sm:$0xf]
  %v187 = vld [vmem:[%s0 + $0xa4] sm:$0xf]
  %v188 = vld [vmem:[%s0 + $0xa8] sm:$0xf]
  %v189 = vld [vmem:[%s0 + $0xac] sm:$0xf]
  %v190 = vld [vmem:[%s0 + $0xb0] sm:$0xf]
  %v191 = vld [vmem:[%s0 + $0xb4] sm:$0xf]
  %v192 = vld [vmem:[%s0 + $0xb8] sm:$0xf]
  %v193 = vld [vmem:[%s0 + $0xbc] sm:$0xf]
  %v194 = vld [vmem:[%s0 + $0xc0] sm:$0xf]
  %v195 = vld [vmem:[%s0 + $0xc4] sm:$0xf]
  %v196 = vld [vmem:[%s0 + $0xc8] sm:$0xf]
  %v197 = vld [vmem:[%s0 + $0xcc] sm:$0xf]
  %v198 = vld [vmem:[%s0 + $0xd0] sm:$0xf]
  %v199 = vld [vmem:[%s0 + $0xd4] sm:$0xf]
  %v200 = vld [vmem:[%s0 + $0xd8] sm:$0xf]
  %v201 = vld [vmem:[%s0 + $0xdc] sm:$0xf]
  %v202 = vld [vmem:[%s0 + $0xe0] sm:$0xf]
  %v203 = vld [vmem:[%s0 + $0xe4] sm:$0xf]
  %v204 = vld [vmem:[%s0 + $0xe8] sm:$0xf]
  %v205 = vld [vmem:[%s0 + $0xec] sm:$0xf]
  %v206 = vld [vmem:[%s0 + $0xf0] sm:$0xf]
  %v207 = vld [vmem:[%s0 + $0xf4] sm:$0xf]
  %v208 = vld [vmem:[%s0 + $0xf8] sm:$0xf]
  %v209 = vld [vmem:[%s0 + $0xfc] sm:$0xf]
  %v210 = vld [vmem:[%s1] sm:$0xf]
  %v211 = vld [vmem:[%s1 + $0x4] sm:$0xf]
  %v212 = vld [vmem:[%s1 + $0x8] sm:$0xf]
  %v213 = vld [vmem:[%s1 + $0xc] sm:$0xf]
  %v214 = vld [vmem:[%s1 + $0x10] sm:$0x3]
  %v279 = vunpack.c.l.b16 %v146
  %v280 = vunpack.c.l.b16 %v147
  %v281 = vunpack.c.l.b16 %v148
  %v282 = vunpack.c.l.b16 %v149
  %v283 = vunpack.c.l.b16 %v150
  %v284 = vunpack.c.l.b16 %v151
  %v285 = vunpack.c.l.b16 %v152
  %v286 = vunpack.c.l.b16 %v153
  %v287 = vunpack.c.l.b16 %v154
  %v288 = vunpack.c.l.b16 %v155
  %v289 = vunpack.c.l.b16 %v156
  %v290 = vunpack.c.l.b16 %v157
  %v291 = vunpack.c.l.b16 %v158
  %v292 = vunpack.c.l.b16 %v159
  %v293 = vunpack.c.l.b16 %v160
  %v294 = vunpack.c.l.b16 %v161
  %v295 = vunpack.c.l.b16 %v162
  %v296 = vunpack.c.l.b16 %v163
  %v297 = vunpack.c.l.b16 %v164
  %v298 = vunpack.c.l.b16 %v165
  %v299 = vunpack.c.l.b16 %v166
  %v300 = vunpack.c.l.b16 %v167
  %v301 = vunpack.c.l.b16 %v168
  %v302 = vunpack.c.l.b16 %v169
  %v303 = vunpack.c.l.b16 %v170
  %v304 = vunpack.c.l.b16 %v171
  %v305 = vunpack.c.l.b16 %v172
  %v306 = vunpack.c.l.b16 %v173
  %v307 = vunpack.c.l.b16 %v174
  %v308 = vunpack.c.l.b16 %v175
  %v309 = vunpack.c.l.b16 %v176
  %v310 = vunpack.c.l.b16 %v177
  %v311 = vunpack.c.l.b16 %v178
  %v312 = vunpack.c.l.b16 %v179
  %v313 = vunpack.c.l.b16 %v180
  %v314 = vunpack.c.l.b16 %v181
  %v315 = vunpack.c.l.b16 %v182
  %v316 = vunpack.c.l.b16 %v183
  %v317 = vunpack.c.l.b16 %v184
  %v318 = vunpack.c.l.b16 %v185
  %v319 = vunpack.c.l.b16 %v186
  %v320 = vunpack.c.l.b16 %v187
  %v321 = vunpack.c.l.b16 %v188
  %v322 = vunpack.c.l.b16 %v189
  %v323 = vunpack.c.l.b16 %v190
  %v324 = vunpack.c.l.b16 %v191
  %v325 = vunpack.c.l.b16 %v192
  %v326 = vunpack.c.l.b16 %v193
  %v327 = vunpack.c.l.b16 %v194
  %v328 = vunpack.c.l.b16 %v195
  %v329 = vunpack.c.l.b16 %v196
  %v330 = vunpack.c.l.b16 %v197
  %v331 = vunpack.c.l.b16 %v198
  %v332 = vunpack.c.l.b16 %v199
  %v333 = vunpack.c.l.b16 %v200
  %v334 = vunpack.c.l.b16 %v201
  %v335 = vunpack.c.l.b16 %v202
  %v336 = vunpack.c.l.b16 %v203
  %v337 = vunpack.c.l.b16 %v204
  %v338 = vunpack.c.l.b16 %v205
  %v339 = vunpack.c.l.b16 %v206
  %v340 = vunpack.c.l.b16 %v207
  %v341 = vunpack.c.l.b16 %v208
  %v342 = vunpack.c.l.b16 %v209
  %v343 = vpack.c.b16 %v280, %v279
  %v344 = vpack.c.b16 %v282, %v281
  %v345 = vpack.c.b16 %v284, %v283
  %v346 = vpack.c.b16 %v286, %v285
  %v347 = vpack.c.b16 %v288, %v287
  %v348 = vpack.c.b16 %v290, %v289
  %v349 = vpack.c.b16 %v292, %v291
  %v350 = vpack.c.b16 %v294, %v293
  %v351 = vpack.c.b16 %v296, %v295
  %v352 = vpack.c.b16 %v298, %v297
  %v353 = vpack.c.b16 %v300, %v299
  %v354 = vpack.c.b16 %v302, %v301
  %v355 = vpack.c.b16 %v304, %v303
  %v356 = vpack.c.b16 %v306, %v305
  %v357 = vpack.c.b16 %v308, %v307
  %v358 = vpack.c.b16 %v310, %v309
  %v359 = vpack.c.b16 %v312, %v311
  %v360 = vpack.c.b16 %v314, %v313
  %v361 = vpack.c.b16 %v316, %v315
  %v362 = vpack.c.b16 %v318, %v317
  %v363 = vpack.c.b16 %v320, %v319
  %v364 = vpack.c.b16 %v322, %v321
  %v365 = vpack.c.b16 %v324, %v323
  %v366 = vpack.c.b16 %v326, %v325
  %v367 = vpack.c.b16 %v328, %v327
  %v368 = vpack.c.b16 %v330, %v329
  %v369 = vpack.c.b16 %v332, %v331
  %v370 = vpack.c.b16 %v334, %v333
  %v371 = vpack.c.b16 %v336, %v335
  %v372 = vpack.c.b16 %v338, %v337
  %v373 = vpack.c.b16 %v340, %v339
  %v374 = vpack.c.b16 %v342, %v341
  %v380 = vunpack.c.l.b16 %v210
  %v381 = vunpack.c.l.b16 %v211
  %v382 = vunpack.c.l.b16 %v212
  %v383 = vunpack.c.l.b16 %v213
  %v384 = vunpack.c.l.b16 %v214
  %v385 = vpack.c.b16 %v381, %v380
  %v386 = vpack.c.b16 %v383, %v382
  %v387 = vpack.c.b16 %v384, %v384
  %vm390 = vcmask 293888
  %v392 = vsel %vm390, %v343, 0
  %v395 = vsel %vm390, %v344, 0
  %v398 = vsel %vm390, %v345, 0
  %v401 = vsel %vm390, %v346, 0
  %v404 = vsel %vm390, %v347, 0
  %v407 = vsel %vm390, %v348, 0
  %v410 = vsel %vm390, %v349, 0
  %v413 = vsel %vm390, %v350, 0
  %v416 = vsel %vm390, %v351, 0
  %v419 = vsel %vm390, %v352, 0
  %v422 = vsel %vm390, %v353, 0
  %v425 = vsel %vm390, %v354, 0
  %v428 = vsel %vm390, %v355, 0
  %v431 = vsel %vm390, %v356, 0
  %v434 = vsel %vm390, %v357, 0
  %v437 = vsel %vm390, %v358, 0
  %v440 = vsel %vm390, %v359, 0
  %v443 = vsel %vm390, %v360, 0
  %v446 = vsel %vm390, %v361, 0
  %v449 = vsel %vm390, %v362, 0
  %v452 = vsel %vm390, %v363, 0
  %v455 = vsel %vm390, %v364, 0
  %v458 = vsel %vm390, %v365, 0
  %v461 = vsel %vm390, %v366, 0
  %v464 = vsel %vm390, %v367, 0
  %v467 = vsel %vm390, %v368, 0
  %v470 = vsel %vm390, %v369, 0
  %v473 = vsel %vm390, %v370, 0
  %v476 = vsel %vm390, %v371, 0
  %v479 = vsel %vm390, %v372, 0
  %v482 = vsel %vm390, %v373, 0
  %v485 = vsel %vm390, %v374, 0
  %vm487 = vcmask 1041408
  %v489 = vsel %vm487, %v387, 0
  %491 = vmatpush.bf16.msra.mxu0 0
  %492 = vmatpush.bf16.msra.mxu0 0
  %493 = vmatpush.bf16.msra.mxu0 0
  %494 = vmatpush.bf16.msra.mxu0 0
  %495 = vmatpush.bf16.msra.mxu0 0
  %496 = vmatpush.bf16.msra.mxu0 %v489
  %497 = vmatpush.bf16.msra.mxu0 %v386
  %498 = vmatpush.bf16.msra.mxu0 %v385
  %499 = vmatmul.bf16.gmra.mxu0 %v392
  %v500 = vpop.f32.mrf.mxu0
  %v501 = vadd.f32 0.0, %v500
  %v502 = vpop.f32.mrf.mxu0
  %v503 = vadd.f32 0.0, %v502
  %504 = vmatmul.bf16.gmra.mxu0 %v395
  %v505 = vpop.f32.mrf.mxu0
  %v506 = vadd.f32 0.0, %v505
  %v507 = vpop.f32.mrf.mxu0
  %v508 = vadd.f32 0.0, %v507
  %509 = vmatmul.bf16.gmra.mxu0 %v398
  %v510 = vpop.f32.mrf.mxu0
  %v511 = vadd.f32 0.0, %v510
  %v512 = vpop.f32.mrf.mxu0
  %v513 = vadd.f32 0.0, %v512
  %514 = vmatmul.bf16.gmra.mxu0 %v401
  %v515 = vpop.f32.mrf.mxu0
  %v516 = vadd.f32 0.0, %v515
  %v517 = vpop.f32.mrf.mxu0
  %v518 = vadd.f32 0.0, %v517
  %519 = vmatmul.bf16.gmra.mxu0 %v404
  %v520 = vpop.f32.mrf.mxu0
  %v521 = vadd.f32 0.0, %v520
  %v522 = vpop.f32.mrf.mxu0
  %v523 = vadd.f32 0.0, %v522
  %524 = vmatmul.bf16.gmra.mxu0 %v407
  %v525 = vpop.f32.mrf.mxu0
  %v526 = vadd.f32 0.0, %v525
  %v527 = vpop.f32.mrf.mxu0
  %v528 = vadd.f32 0.0, %v527
  %529 = vmatmul.bf16.gmra.mxu0 %v410
  %v530 = vpop.f32.mrf.mxu0
  %v531 = vadd.f32 0.0, %v530
  %v532 = vpop.f32.mrf.mxu0
  %v533 = vadd.f32 0.0, %v532
  %534 = vmatmul.bf16.gmra.mxu0 %v413
  %v535 = vpop.f32.mrf.mxu0
  %v536 = vadd.f32 0.0, %v535
  %v537 = vpop.f32.mrf.mxu0
  %v538 = vadd.f32 0.0, %v537
  %539 = vmatmul.bf16.gmra.mxu0 %v416
  %v540 = vpop.f32.mrf.mxu0
  %v541 = vadd.f32 0.0, %v540
  %v542 = vpop.f32.mrf.mxu0
  %v543 = vadd.f32 0.0, %v542
  %544 = vmatmul.bf16.gmra.mxu0 %v419
  %v545 = vpop.f32.mrf.mxu0
  %v546 = vadd.f32 0.0, %v545
  %v547 = vpop.f32.mrf.mxu0
  %v548 = vadd.f32 0.0, %v547
  %549 = vmatmul.bf16.gmra.mxu0 %v422
  %v550 = vpop.f32.mrf.mxu0
  %v551 = vadd.f32 0.0, %v550
  %v552 = vpop.f32.mrf.mxu0
  %v553 = vadd.f32 0.0, %v552
  %554 = vmatmul.bf16.gmra.mxu0 %v425
  %v555 = vpop.f32.mrf.mxu0
  %v556 = vadd.f32 0.0, %v555
  %v557 = vpop.f32.mrf.mxu0
  %v558 = vadd.f32 0.0, %v557
  %559 = vmatmul.bf16.gmra.mxu0 %v428
  %v560 = vpop.f32.mrf.mxu0
  %v561 = vadd.f32 0.0, %v560
  %v562 = vpop.f32.mrf.mxu0
  %v563 = vadd.f32 0.0, %v562
  %564 = vmatmul.bf16.gmra.mxu0 %v431
  %v565 = vpop.f32.mrf.mxu0
  %v566 = vadd.f32 0.0, %v565
  %v567 = vpop.f32.mrf.mxu0
  %v568 = vadd.f32 0.0, %v567
  %569 = vmatmul.bf16.gmra.mxu0 %v434
  %v570 = vpop.f32.mrf.mxu0
  %v571 = vadd.f32 0.0, %v570
  %v572 = vpop.f32.mrf.mxu0
  %v573 = vadd.f32 0.0, %v572
  %574 = vmatmul.bf16.gmra.mxu0 %v437
  %v575 = vpop.f32.mrf.mxu0
  %v576 = vadd.f32 0.0, %v575
  %v577 = vpop.f32.mrf.mxu0
  %v578 = vadd.f32 0.0, %v577
  %579 = vmatmul.bf16.gmra.mxu0 %v440
  %v580 = vpop.f32.mrf.mxu0
  %v581 = vadd.f32 0.0, %v580
  %v582 = vpop.f32.mrf.mxu0
  %v583 = vadd.f32 0.0, %v582
  %584 = vmatmul.bf16.gmra.mxu0 %v443
  %v585 = vpop.f32.mrf.mxu0
  %v586 = vadd.f32 0.0, %v585
  %v587 = vpop.f32.mrf.mxu0
  %v588 = vadd.f32 0.0, %v587
  %589 = vmatmul.bf16.gmra.mxu0 %v446
  %v590 = vpop.f32.mrf.mxu0
  %v591 = vadd.f32 0.0, %v590
  %v592 = vpop.f32.mrf.mxu0
  %v593 = vadd.f32 0.0, %v592
  %594 = vmatmul.bf16.gmra.mxu0 %v449
  %v595 = vpop.f32.mrf.mxu0
  %v596 = vadd.f32 0.0, %v595
  %v597 = vpop.f32.mrf.mxu0
  %v598 = vadd.f32 0.0, %v597
  %599 = vmatmul.bf16.gmra.mxu0 %v452
  %v600 = vpop.f32.mrf.mxu0
  %v601 = vadd.f32 0.0, %v600
  %v602 = vpop.f32.mrf.mxu0
  %v603 = vadd.f32 0.0, %v602
  %604 = vmatmul.bf16.gmra.mxu0 %v455
  %v605 = vpop.f32.mrf.mxu0
  %v606 = vadd.f32 0.0, %v605
  %v607 = vpop.f32.mrf.mxu0
  %v608 = vadd.f32 0.0, %v607
  %609 = vmatmul.bf16.gmra.mxu0 %v458
  %v610 = vpop.f32.mrf.mxu0
  %v611 = vadd.f32 0.0, %v610
  %v612 = vpop.f32.mrf.mxu0
  %v613 = vadd.f32 0.0, %v612
  %614 = vmatmul.bf16.gmra.mxu0 %v461
  %v615 = vpop.f32.mrf.mxu0
  %v616 = vadd.f32 0.0, %v615
  %v617 = vpop.f32.mrf.mxu0
  %v618 = vadd.f32 0.0, %v617
  %619 = vmatmul.bf16.gmra.mxu0 %v464
  %v620 = vpop.f32.mrf.mxu0
  %v621 = vadd.f32 0.0, %v620
  %v622 = vpop.f32.mrf.mxu0
  %v623 = vadd.f32 0.0, %v622
  %624 = vmatmul.bf16.gmra.mxu0 %v467
  %v625 = vpop.f32.mrf.mxu0
  %v626 = vadd.f32 0.0, %v625
  %v627 = vpop.f32.mrf.mxu0
  %v628 = vadd.f32 0.0, %v627
  %629 = vmatmul.bf16.gmra.mxu0 %v470
  %v630 = vpop.f32.mrf.mxu0
  %v631 = vadd.f32 0.0, %v630
  %v632 = vpop.f32.mrf.mxu0
  %v633 = vadd.f32 0.0, %v632
  %634 = vmatmul.bf16.gmra.mxu0 %v473
  %v635 = vpop.f32.mrf.mxu0
  %v636 = vadd.f32 0.0, %v635
  %v637 = vpop.f32.mrf.mxu0
  %v638 = vadd.f32 0.0, %v637
  %639 = vmatmul.bf16.gmra.mxu0 %v476
  %v640 = vpop.f32.mrf.mxu0
  %v641 = vadd.f32 0.0, %v640
  %v642 = vpop.f32.mrf.mxu0
  %v643 = vadd.f32 0.0, %v642
  %644 = vmatmul.bf16.gmra.mxu0 %v479
  %v645 = vpop.f32.mrf.mxu0
  %v646 = vadd.f32 0.0, %v645
  %v647 = vpop.f32.mrf.mxu0
  %v648 = vadd.f32 0.0, %v647
  %649 = vmatmul.bf16.gmra.mxu0 %v482
  %v650 = vpop.f32.mrf.mxu0
  %v651 = vadd.f32 0.0, %v650
  %v652 = vpop.f32.mrf.mxu0
  %v653 = vadd.f32 0.0, %v652
  %654 = vmatmul.bf16.gmra.mxu0 %v485
  %v655 = vpop.f32.mrf.mxu0
  %v656 = vadd.f32 0.0, %v655
  %v657 = vpop.f32.mrf.mxu0
  %v658 = vadd.f32 0.0, %v657
  %659 = vdwg.mxu0
  %v660 = vadd.f32 %v82, %v501
  %v661 = vadd.f32 %v83, %v503
  %v662 = vadd.f32 %v84, %v506
  %v663 = vadd.f32 %v85, %v508
  %v664 = vadd.f32 %v86, %v511
  %v665 = vadd.f32 %v87, %v513
  %v666 = vadd.f32 %v88, %v516
  %v667 = vadd.f32 %v89, %v518
  %v668 = vadd.f32 %v90, %v521
  %v669 = vadd.f32 %v91, %v523
  %v670 = vadd.f32 %v92, %v526
  %v671 = vadd.f32 %v93, %v528
  %v672 = vadd.f32 %v94, %v531
  %v673 = vadd.f32 %v95, %v533
  %v674 = vadd.f32 %v96, %v536
  %v675 = vadd.f32 %v97, %v538
  %v676 = vadd.f32 %v98, %v541
  %v677 = vadd.f32 %v99, %v543
  %v678 = vadd.f32 %v100, %v546
  %v679 = vadd.f32 %v101, %v548
  %v680 = vadd.f32 %v102, %v551
  %v681 = vadd.f32 %v103, %v553
  %v682 = vadd.f32 %v104, %v556
  %v683 = vadd.f32 %v105, %v558
  %v684 = vadd.f32 %v106, %v561
  %v685 = vadd.f32 %v107, %v563
  %v686 = vadd.f32 %v108, %v566
  %v687 = vadd.f32 %v109, %v568
  %v688 = vadd.f32 %v110, %v571
  %v689 = vadd.f32 %v111, %v573
  %v690 = vadd.f32 %v112, %v576
  %v691 = vadd.f32 %v113, %v578
  %v692 = vadd.f32 %v114, %v581
  %v693 = vadd.f32 %v115, %v583
  %v694 = vadd.f32 %v116, %v586
  %v695 = vadd.f32 %v117, %v588
  %v696 = vadd.f32 %v118, %v591
  %v697 = vadd.f32 %v119, %v593
  %v698 = vadd.f32 %v120, %v596
  %v699 = vadd.f32 %v121, %v598
  %v700 = vadd.f32 %v122, %v601
  %v701 = vadd.f32 %v123, %v603
  %v702 = vadd.f32 %v124, %v606
  %v703 = vadd.f32 %v125, %v608
  %v704 = vadd.f32 %v126, %v611
  %v705 = vadd.f32 %v127, %v613
  %v706 = vadd.f32 %v128, %v616
  %v707 = vadd.f32 %v129, %v618
  %v708 = vadd.f32 %v130, %v621
  %v709 = vadd.f32 %v131, %v623
  %v710 = vadd.f32 %v132, %v626
  %v711 = vadd.f32 %v133, %v628
  %v712 = vadd.f32 %v134, %v631
  %v713 = vadd.f32 %v135, %v633
  %v714 = vadd.f32 %v136, %v636
  %v715 = vadd.f32 %v137, %v638
  %v716 = vadd.f32 %v138, %v641
  %v717 = vadd.f32 %v139, %v643
  %v718 = vadd.f32 %v140, %v646
  %v719 = vadd.f32 %v141, %v648
  %v720 = vadd.f32 %v142, %v651
  %v721 = vadd.f32 %v143, %v653
  %v722 = vadd.f32 %v144, %v656
  %v723 = vadd.f32 %v145, %v658
  %724 = vst [vmem:[#allocation2] sm:$0xff] %v660
  %725 = vst [vmem:[#allocation2 + $0x8] sm:$0xff] %v661
  %726 = vst [vmem:[#allocation2 + $0x10] sm:$0xff] %v662
  %727 = vst [vmem:[#allocation2 + $0x18] sm:$0xff] %v663
  %728 = vst [vmem:[#allocation2 + $0x20] sm:$0xff] %v664
  %729 = vst [vmem:[#allocation2 + $0x28] sm:$0xff] %v665
  %730 = vst [vmem:[#allocation2 + $0x30] sm:$0xff] %v666
  %731 = vst [vmem:[#allocation2 + $0x38] sm:$0xff] %v667
  %732 = vst [vmem:[#allocation2 + $0x40] sm:$0xff] %v668
  %733 = vst [vmem:[#allocation2 + $0x48] sm:$0xff] %v669
  %734 = vst [vmem:[#allocation2 + $0x50] sm:$0xff] %v670
  %735 = vst [vmem:[#allocation2 + $0x58] sm:$0xff] %v671
  %736 = vst [vmem:[#allocation2 + $0x60] sm:$0xff] %v672
  %737 = vst [vmem:[#allocation2 + $0x68] sm:$0xff] %v673
  %738 = vst [vmem:[#allocation2 + $0x70] sm:$0xff] %v674
  %739 = vst [vmem:[#allocation2 + $0x78] sm:$0xff] %v675
  %740 = vst [vmem:[#allocation2 + $0x80] sm:$0xff] %v676
  %741 = vst [vmem:[#allocation2 + $0x88] sm:$0xff] %v677
  %742 = vst [vmem:[#allocation2 + $0x90] sm:$0xff] %v678
  %743 = vst [vmem:[#allocation2 + $0x98] sm:$0xff] %v679
  %744 = vst [vmem:[#allocation2 + $0xa0] sm:$0xff] %v680
  %745 = vst [vmem:[#allocation2 + $0xa8] sm:$0xff] %v681
  %746 = vst [vmem:[#allocation2 + $0xb0] sm:$0xff] %v682
  %747 = vst [vmem:[#allocation2 + $0xb8] sm:$0xff] %v683
  %748 = vst [vmem:[#allocation2 + $0xc0] sm:$0xff] %v684
  %749 = vst [vmem:[#allocation2 + $0xc8] sm:$0xff] %v685
  %750 = vst [vmem:[#allocation2 + $0xd0] sm:$0xff] %v686
  %751 = vst [vmem:[#allocation2 + $0xd8] sm:$0xff] %v687
  %752 = vst [vmem:[#allocation2 + $0xe0] sm:$0xff] %v688
  %753 = vst [vmem:[#allocation2 + $0xe8] sm:$0xff] %v689
  %754 = vst [vmem:[#allocation2 + $0xf0] sm:$0xff] %v690
  %755 = vst [vmem:[#allocation2 + $0xf8] sm:$0xff] %v691
  %756 = vst [vmem:[#allocation2 + $0x100] sm:$0xff] %v692
  %757 = vst [vmem:[#allocation2 + $0x108] sm:$0xff] %v693
  %758 = vst [vmem:[#allocation2 + $0x110] sm:$0xff] %v694
  %759 = vst [vmem:[#allocation2 + $0x118] sm:$0xff] %v695
  %760 = vst [vmem:[#allocation2 + $0x120] sm:$0xff] %v696
  %761 = vst [vmem:[#allocation2 + $0x128] sm:$0xff] %v697
  %762 = vst [vmem:[#allocation2 + $0x130] sm:$0xff] %v698
  %763 = vst [vmem:[#allocation2 + $0x138] sm:$0xff] %v699
  %764 = vst [vmem:[#allocation2 + $0x140] sm:$0xff] %v700
  %765 = vst [vmem:[#allocation2 + $0x148] sm:$0xff] %v701
  %766 = vst [vmem:[#allocation2 + $0x150] sm:$0xff] %v702
  %767 = vst [vmem:[#allocation2 + $0x158] sm:$0xff] %v703
  %768 = vst [vmem:[#allocation2 + $0x160] sm:$0xff] %v704
  %769 = vst [vmem:[#allocation2 + $0x168] sm:$0xff] %v705
  %770 = vst [vmem:[#allocation2 + $0x170] sm:$0xff] %v706
  %771 = vst [vmem:[#allocation2 + $0x178] sm:$0xff] %v707
  %772 = vst [vmem:[#allocation2 + $0x180] sm:$0xff] %v708
  %773 = vst [vmem:[#allocation2 + $0x188] sm:$0xff] %v709
  %774 = vst [vmem:[#allocation2 + $0x190] sm:$0xff] %v710
  %775 = vst [vmem:[#allocation2 + $0x198] sm:$0xff] %v711
  %776 = vst [vmem:[#allocation2 + $0x1a0] sm:$0xff] %v712
  %777 = vst [vmem:[#allocation2 + $0x1a8] sm:$0xff] %v713
  %778 = vst [vmem:[#allocation2 + $0x1b0] sm:$0xff] %v714
  %779 = vst [vmem:[#allocation2 + $0x1b8] sm:$0xff] %v715
  %780 = vst [vmem:[#allocation2 + $0x1c0] sm:$0xff] %v716
  %781 = vst [vmem:[#allocation2 + $0x1c8] sm:$0xff] %v717
  %782 = vst [vmem:[#allocation2 + $0x1d0] sm:$0xff] %v718
  %783 = vst [vmem:[#allocation2 + $0x1d8] sm:$0xff] %v719
  %784 = vst [vmem:[#allocation2 + $0x1e0] sm:$0xff] %v720
  %785 = vst [vmem:[#allocation2 + $0x1e8] sm:$0xff] %v721
  %786 = vst [vmem:[#allocation2 + $0x1f0] sm:$0xff] %v722
  %787 = vst [vmem:[#allocation2 + $0x1f8] sm:$0xff] %v723
  // Predicated region
  $region14: #{basic_block_enc.4} parent=0 // pred_check
    %p788 = pneg %p14
  $region15: #{basic_block_enc.4} parent=0 // pred_check_branch
    %790 = sbr.rel (%p788) target = $region17
  $region16: #{basic_block_enc.4} parent=0 // pred_region
    %v791 = vld [vmem:[#allocation2] sm:$0xff]
    %v792 = vld [vmem:[#allocation2 + $0x8] sm:$0xff]
    %v793 = vld [vmem:[#allocation2 + $0x10] sm:$0xff]
    %v794 = vld [vmem:[#allocation2 + $0x18] sm:$0xff]
    %v795 = vld [vmem:[#allocation2 + $0x20] sm:$0xff]
    %v796 = vld [vmem:[#allocation2 + $0x28] sm:$0xff]
    %v797 = vld [vmem:[#allocation2 + $0x30] sm:$0xff]
    %v798 = vld [vmem:[#allocation2 + $0x38] sm:$0xff]
    %v799 = vld [vmem:[#allocation2 + $0x40] sm:$0xff]
    %v800 = vld [vmem:[#allocation2 + $0x48] sm:$0xff]
    %v801 = vld [vmem:[#allocation2 + $0x50] sm:$0xff]
    %v802 = vld [vmem:[#allocation2 + $0x58] sm:$0xff]
    %v803 = vld [vmem:[#allocation2 + $0x60] sm:$0xff]
    %v804 = vld [vmem:[#allocation2 + $0x68] sm:$0xff]
    %v805 = vld [vmem:[#allocation2 + $0x70] sm:$0xff]
    %v806 = vld [vmem:[#allocation2 + $0x78] sm:$0xff]
    %v807 = vld [vmem:[#allocation2 + $0x80] sm:$0xff]
    %v808 = vld [vmem:[#allocation2 + $0x88] sm:$0xff]
    %v809 = vld [vmem:[#allocation2 + $0x90] sm:$0xff]
    %v810 = vld [vmem:[#allocation2 + $0x98] sm:$0xff]
    %v811 = vld [vmem:[#allocation2 + $0xa0] sm:$0xff]
    %v812 = vld [vmem:[#allocation2 + $0xa8] sm:$0xff]
    %v813 = vld [vmem:[#allocation2 + $0xb0] sm:$0xff]
    %v814 = vld [vmem:[#allocation2 + $0xb8] sm:$0xff]
    %v815 = vld [vmem:[#allocation2 + $0xc0] sm:$0xff]
    %v816 = vld [vmem:[#allocation2 + $0xc8] sm:$0xff]
    %v817 = vld [vmem:[#allocation2 + $0xd0] sm:$0xff]
    %v818 = vld [vmem:[#allocation2 + $0xd8] sm:$0xff]
    %v819 = vld [vmem:[#allocation2 + $0xe0] sm:$0xff]
    %v820 = vld [vmem:[#allocation2 + $0xe8] sm:$0xff]
    %v821 = vld [vmem:[#allocation2 + $0xf0] sm:$0xff]
    %v822 = vld [vmem:[#allocation2 + $0xf8] sm:$0xff]
    %v823 = vld [vmem:[#allocation2 + $0x100] sm:$0xff]
    %v824 = vld [vmem:[#allocation2 + $0x108] sm:$0xff]
    %v825 = vld [vmem:[#allocation2 + $0x110] sm:$0xff]
    %v826 = vld [vmem:[#allocation2 + $0x118] sm:$0xff]
    %v827 = vld [vmem:[#allocation2 + $0x120] sm:$0xff]
    %v828 = vld [vmem:[#allocation2 + $0x128] sm:$0xff]
    %v829 = vld [vmem:[#allocation2 + $0x130] sm:$0xff]
    %v830 = vld [vmem:[#allocation2 + $0x138] sm:$0xff]
    %v831 = vld [vmem:[#allocation2 + $0x140] sm:$0xff]
    %v832 = vld [vmem:[#allocation2 + $0x148] sm:$0xff]
    %v833 = vld [vmem:[#allocation2 + $0x150] sm:$0xff]
    %v834 = vld [vmem:[#allocation2 + $0x158] sm:$0xff]
    %v835 = vld [vmem:[#allocation2 + $0x160] sm:$0xff]
    %v836 = vld [vmem:[#allocation2 + $0x168] sm:$0xff]
    %v837 = vld [vmem:[#allocation2 + $0x170] sm:$0xff]
    %v838 = vld [vmem:[#allocation2 + $0x178] sm:$0xff]
    %v839 = vld [vmem:[#allocation2 + $0x180] sm:$0xff]
    %v840 = vld [vmem:[#allocation2 + $0x188] sm:$0xff]
    %v841 = vld [vmem:[#allocation2 + $0x190] sm:$0xff]
    %v842 = vld [vmem:[#allocation2 + $0x198] sm:$0xff]
    %v843 = vld [vmem:[#allocation2 + $0x1a0] sm:$0xff]
    %v844 = vld [vmem:[#allocation2 + $0x1a8] sm:$0xff]
    %v845 = vld [vmem:[#allocation2 + $0x1b0] sm:$0xff]
    %v846 = vld [vmem:[#allocation2 + $0x1b8] sm:$0xff]
    %v847 = vld [vmem:[#allocation2 + $0x1c0] sm:$0xff]
    %v848 = vld [vmem:[#allocation2 + $0x1c8] sm:$0xff]
    %v849 = vld [vmem:[#allocation2 + $0x1d0] sm:$0xff]
    %v850 = vld [vmem:[#allocation2 + $0x1d8] sm:$0xff]
    %v851 = vld [vmem:[#allocation2 + $0x1e0] sm:$0xff]
    %v852 = vld [vmem:[#allocation2 + $0x1e8] sm:$0xff]
    %v853 = vld [vmem:[#allocation2 + $0x1f0] sm:$0xff]
    %v854 = vld [vmem:[#allocation2 + $0x1f8] sm:$0xff]
    %v855 = vpack.c.bf16 %v791, %v791
    %v856 = vpack.c.bf16 %v792, %v792
    %v857 = vpack.c.bf16 %v793, %v793
    %v858 = vpack.c.bf16 %v794, %v794
    %v859 = vpack.c.bf16 %v795, %v795
    %v860 = vpack.c.bf16 %v796, %v796
    %v861 = vpack.c.bf16 %v797, %v797
    %v862 = vpack.c.bf16 %v798, %v798
    %v863 = vpack.c.bf16 %v799, %v799
    %v864 = vpack.c.bf16 %v800, %v800
    %v865 = vpack.c.bf16 %v801, %v801
    %v866 = vpack.c.bf16 %v802, %v802
    %v867 = vpack.c.bf16 %v803, %v803
    %v868 = vpack.c.bf16 %v804, %v804
    %v869 = vpack.c.bf16 %v805, %v805
    %v870 = vpack.c.bf16 %v806, %v806
    %v871 = vpack.c.bf16 %v807, %v807
    %v872 = vpack.c.bf16 %v808, %v808
    %v873 = vpack.c.bf16 %v809, %v809
    %v874 = vpack.c.bf16 %v810, %v810
    %v875 = vpack.c.bf16 %v811, %v811
    %v876 = vpack.c.bf16 %v812, %v812
    %v877 = vpack.c.bf16 %v813, %v813
    %v878 = vpack.c.bf16 %v814, %v814
    %v879 = vpack.c.bf16 %v815, %v815
    %v880 = vpack.c.bf16 %v816, %v816
    %v881 = vpack.c.bf16 %v817, %v817
    %v882 = vpack.c.bf16 %v818, %v818
    %v883 = vpack.c.bf16 %v819, %v819
    %v884 = vpack.c.bf16 %v820, %v820
    %v885 = vpack.c.bf16 %v821, %v821
    %v886 = vpack.c.bf16 %v822, %v822
    %v887 = vpack.c.bf16 %v823, %v823
    %v888 = vpack.c.bf16 %v824, %v824
    %v889 = vpack.c.bf16 %v825, %v825
    %v890 = vpack.c.bf16 %v826, %v826
    %v891 = vpack.c.bf16 %v827, %v827
    %v892 = vpack.c.bf16 %v828, %v828
    %v893 = vpack.c.bf16 %v829, %v829
    %v894 = vpack.c.bf16 %v830, %v830
    %v895 = vpack.c.bf16 %v831, %v831
    %v896 = vpack.c.bf16 %v832, %v832
    %v897 = vpack.c.bf16 %v833, %v833
    %v898 = vpack.c.bf16 %v834, %v834
    %v899 = vpack.c.bf16 %v835, %v835
    %v900 = vpack.c.bf16 %v836, %v836
    %v901 = vpack.c.bf16 %v837, %v837
    %v902 = vpack.c.bf16 %v838, %v838
    %v903 = vpack.c.bf16 %v839, %v839
    %v904 = vpack.c.bf16 %v840, %v840
    %v905 = vpack.c.bf16 %v841, %v841
    %v906 = vpack.c.bf16 %v842, %v842
    %v907 = vpack.c.bf16 %v843, %v843
    %v908 = vpack.c.bf16 %v844, %v844
    %v909 = vpack.c.bf16 %v845, %v845
    %v910 = vpack.c.bf16 %v846, %v846
    %v911 = vpack.c.bf16 %v847, %v847
    %v912 = vpack.c.bf16 %v848, %v848
    %v913 = vpack.c.bf16 %v849, %v849
    %v914 = vpack.c.bf16 %v850, %v850
    %v915 = vpack.c.bf16 %v851, %v851
    %v916 = vpack.c.bf16 %v852, %v852
    %v917 = vpack.c.bf16 %v853, %v853
    %v918 = vpack.c.bf16 %v854, %v854
    %919 = vst [vmem:[%s2] sm:$0xf] %v855
    %920 = vst [vmem:[%s2 + $0x4] sm:$0xf] %v856
    %921 = vst [vmem:[%s2 + $0x8] sm:$0xf] %v857
    %922 = vst [vmem:[%s2 + $0xc] sm:$0xf] %v858
    %923 = vst [vmem:[%s2 + $0x10] sm:$0xf] %v859
    %924 = vst [vmem:[%s2 + $0x14] sm:$0xf] %v860
    %925 = vst [vmem:[%s2 + $0x18] sm:$0xf] %v861
    %926 = vst [vmem:[%s2 + $0x1c] sm:$0xf] %v862
    %927 = vst [vmem:[%s2 + $0x20] sm:$0xf] %v863
    %928 = vst [vmem:[%s2 + $0x24] sm:$0xf] %v864
    %929 = vst [vmem:[%s2 + $0x28] sm:$0xf] %v865
    %930 = vst [vmem:[%s2 + $0x2c] sm:$0xf] %v866
    %931 = vst [vmem:[%s2 + $0x30] sm:$0xf] %v867
    %932 = vst [vmem:[%s2 + $0x34] sm:$0xf] %v868
    %933 = vst [vmem:[%s2 + $0x38] sm:$0xf] %v869
    %934 = vst [vmem:[%s2 + $0x3c] sm:$0xf] %v870
    %935 = vst [vmem:[%s2 + $0x40] sm:$0xf] %v871
    %936 = vst [vmem:[%s2 + $0x44] sm:$0xf] %v872
    %937 = vst [vmem:[%s2 + $0x48] sm:$0xf] %v873
    %938 = vst [vmem:[%s2 + $0x4c] sm:$0xf] %v874
    %939 = vst [vmem:[%s2 + $0x50] sm:$0xf] %v875
    %940 = vst [vmem:[%s2 + $0x54] sm:$0xf] %v876
    %941 = vst [vmem:[%s2 + $0x58] sm:$0xf] %v877
    %942 = vst [vmem:[%s2 + $0x5c] sm:$0xf] %v878
    %943 = vst [vmem:[%s2 + $0x60] sm:$0xf] %v879
    %944 = vst [vmem:[%s2 + $0x64] sm:$0xf] %v880
    %945 = vst [vmem:[%s2 + $0x68] sm:$0xf] %v881
    %946 = vst [vmem:[%s2 + $0x6c] sm:$0xf] %v882
    %947 = vst [vmem:[%s2 + $0x70] sm:$0xf] %v883
    %948 = vst [vmem:[%s2 + $0x74] sm:$0xf] %v884
    %949 = vst [vmem:[%s2 + $0x78] sm:$0xf] %v885
    %950 = vst [vmem:[%s2 + $0x7c] sm:$0xf] %v886
    %951 = vst [vmem:[%s2 + $0x80] sm:$0xf] %v887
    %952 = vst [vmem:[%s2 + $0x84] sm:$0xf] %v888
    %953 = vst [vmem:[%s2 + $0x88] sm:$0xf] %v889
    %954 = vst [vmem:[%s2 + $0x8c] sm:$0xf] %v890
    %955 = vst [vmem:[%s2 + $0x90] sm:$0xf] %v891
    %956 = vst [vmem:[%s2 + $0x94] sm:$0xf] %v892
    %957 = vst [vmem:[%s2 + $0x98] sm:$0xf] %v893
    %958 = vst [vmem:[%s2 + $0x9c] sm:$0xf] %v894
    %959 = vst [vmem:[%s2 + $0xa0] sm:$0xf] %v895
    %960 = vst [vmem:[%s2 + $0xa4] sm:$0xf] %v896
    %961 = vst [vmem:[%s2 + $0xa8] sm:$0xf] %v897
    %962 = vst [vmem:[%s2 + $0xac] sm:$0xf] %v898
    %963 = vst [vmem:[%s2 + $0xb0] sm:$0xf] %v899
    %964 = vst [vmem:[%s2 + $0xb4] sm:$0xf] %v900
    %965 = vst [vmem:[%s2 + $0xb8] sm:$0xf] %v901
    %966 = vst [vmem:[%s2 + $0xbc] sm:$0xf] %v902
    %967 = vst [vmem:[%s2 + $0xc0] sm:$0xf] %v903
    %968 = vst [vmem:[%s2 + $0xc4] sm:$0xf] %v904
    %969 = vst [vmem:[%s2 + $0xc8] sm:$0xf] %v905
    %970 = vst [vmem:[%s2 + $0xcc] sm:$0xf] %v906
    %971 = vst [vmem:[%s2 + $0xd0] sm:$0xf] %v907
    %972 = vst [vmem:[%s2 + $0xd4] sm:$0xf] %v908
    %973 = vst [vmem:[%s2 + $0xd8] sm:$0xf] %v909
    %974 = vst [vmem:[%s2 + $0xdc] sm:$0xf] %v910
    %975 = vst [vmem:[%s2 + $0xe0] sm:$0xf] %v911
    %976 = vst [vmem:[%s2 + $0xe4] sm:$0xf] %v912
    %977 = vst [vmem:[%s2 + $0xe8] sm:$0xf] %v913
    %978 = vst [vmem:[%s2 + $0xec] sm:$0xf] %v914
    %979 = vst [vmem:[%s2 + $0xf0] sm:$0xf] %v915
    %980 = vst [vmem:[%s2 + $0xf4] sm:$0xf] %v916
    %981 = vst [vmem:[%s2 + $0xf8] sm:$0xf] %v917
    %982 = vst [vmem:[%s2 + $0xfc] sm:$0xf] %v918
    %v983 = vadd.f32 %v791, %v792
    %v984 = vadd.f32 %v983, %v793
    %v985 = vadd.f32 %v984, %v794
    %v986 = vadd.f32 %v985, %v795
    %v987 = vadd.f32 %v986, %v796
    %v988 = vadd.f32 %v987, %v797
    %v989 = vadd.f32 %v988, %v798
    %v990 = vadd.f32 %v989, %v799
    %v991 = vadd.f32 %v990, %v800
    %v992 = vadd.f32 %v991, %v801
    %v993 = vadd.f32 %v992, %v802
    %v994 = vadd.f32 %v993, %v803
    %v995 = vadd.f32 %v994, %v804
    %v996 = vadd.f32 %v995, %v805
    %v997 = vadd.f32 %v996, %v806
    %v998 = vadd.f32 %v997, %v807
    %v999 = vadd.f32 %v998, %v808
    %v1000 = vadd.f32 %v999, %v809
    %v1001 = vadd.f32 %v1000, %v810
    %v1002 = vadd.f32 %v1001, %v811
    %v1003 = vadd.f32 %v1002, %v812
    %v1004 = vadd.f32 %v1003, %v813
    %v1005 = vadd.f32 %v1004, %v814
    %v1006 = vadd.f32 %v1005, %v815
    %v1007 = vadd.f32 %v1006, %v816
    %v1008 = vadd.f32 %v1007, %v817
    %v1009 = vadd.f32 %v1008, %v818
    %v1010 = vadd.f32 %v1009, %v819
    %v1011 = vadd.f32 %v1010, %v820
    %v1012 = vadd.f32 %v1011, %v821
    %v1013 = vadd.f32 %v1012, %v822
    %v1014 = vadd.f32 %v1013, %v823
    %v1015 = vadd.f32 %v1014, %v824
    %v1016 = vadd.f32 %v1015, %v825
    %v1017 = vadd.f32 %v1016, %v826
    %v1018 = vadd.f32 %v1017, %v827
    %v1019 = vadd.f32 %v1018, %v828
    %v1020 = vadd.f32 %v1019, %v829
    %v1021 = vadd.f32 %v1020, %v830
    %v1022 = vadd.f32 %v1021, %v831
    %v1023 = vadd.f32 %v1022, %v832
    %v1024 = vadd.f32 %v1023, %v833
    %v1025 = vadd.f32 %v1024, %v834
    %v1026 = vadd.f32 %v1025, %v835
    %v1027 = vadd.f32 %v1026, %v836
    %v1028 = vadd.f32 %v1027, %v837
    %v1029 = vadd.f32 %v1028, %v838
    %v1030 = vadd.f32 %v1029, %v839
    %v1031 = vadd.f32 %v1030, %v840
    %v1032 = vadd.f32 %v1031, %v841
    %v1033 = vadd.f32 %v1032, %v842
    %v1034 = vadd.f32 %v1033, %v843
    %v1035 = vadd.f32 %v1034, %v844
    %v1036 = vadd.f32 %v1035, %v845
    %v1037 = vadd.f32 %v1036, %v846
    %v1038 = vadd.f32 %v1037, %v847
    %v1039 = vadd.f32 %v1038, %v848
    %v1040 = vadd.f32 %v1039, %v849
    %v1041 = vadd.f32 %v1040, %v850
    %v1042 = vadd.f32 %v1041, %v851
    %v1043 = vadd.f32 %v1042, %v852
    %v1044 = vadd.f32 %v1043, %v853
    %v1045 = vadd.f32 %v1044, %v854
    %v1046 = vrot.slane %v1045, 4
    %v1047 = vadd.f32 %v1045, %v1046
    %v1048 = vrot.slane %v1047, 2
    %v1049 = vadd.f32 %v1047, %v1048
    %v1050 = vrot.slane %v1049, 1
    %v1051 = vadd.f32 %v1049, %v1050
    %1052 = vst [vmem:[%s3] sm:$0x1] %v1051
    %v1053 = vmul.f32 %v791, %v791
    %v1054 = vmul.f32 %v792, %v792
    %v1055 = vmul.f32 %v793, %v793
    %v1056 = vmul.f32 %v794, %v794
    %v1057 = vmul.f32 %v795, %v795
    %v1058 = vmul.f32 %v796, %v796
    %v1059 = vmul.f32 %v797, %v797
    %v1060 = vmul.f32 %v798, %v798
    %v1061 = vmul.f32 %v799, %v799
    %v1062 = vmul.f32 %v800, %v800
    %v1063 = vmul.f32 %v801, %v801
    %v1064 = vmul.f32 %v802, %v802
    %v1065 = vmul.f32 %v803, %v803
    %v1066 = vmul.f32 %v804, %v804
    %v1067 = vmul.f32 %v805, %v805
    %v1068 = vmul.f32 %v806, %v806
    %v1069 = vmul.f32 %v807, %v807
    %v1070 = vmul.f32 %v808, %v808
    %v1071 = vmul.f32 %v809, %v809
    %v1072 = vmul.f32 %v810, %v810
    %v1073 = vmul.f32 %v811, %v811
    %v1074 = vmul.f32 %v812, %v812
    %v1075 = vmul.f32 %v813, %v813
    %v1076 = vmul.f32 %v814, %v814
    %v1077 = vmul.f32 %v815, %v815
    %v1078 = vmul.f32 %v816, %v816
    %v1079 = vmul.f32 %v817, %v817
    %v1080 = vmul.f32 %v818, %v818
    %v1081 = vmul.f32 %v819, %v819
    %v1082 = vmul.f32 %v820, %v820
    %v1083 = vmul.f32 %v821, %v821
    %v1084 = vmul.f32 %v822, %v822
    %v1085 = vmul.f32 %v823, %v823
    %v1086 = vmul.f32 %v824, %v824
    %v1087 = vmul.f32 %v825, %v825
    %v1088 = vmul.f32 %v826, %v826
    %v1089 = vmul.f32 %v827, %v827
    %v1090 = vmul.f32 %v828, %v828
    %v1091 = vmul.f32 %v829, %v829
    %v1092 = vmul.f32 %v830, %v830
    %v1093 = vmul.f32 %v831, %v831
    %v1094 = vmul.f32 %v832, %v832
    %v1095 = vmul.f32 %v833, %v833
    %v1096 = vmul.f32 %v834, %v834
    %v1097 = vmul.f32 %v835, %v835
    %v1098 = vmul.f32 %v836, %v836
    %v1099 = vmul.f32 %v837, %v837
    %v1100 = vmul.f32 %v838, %v838
    %v1101 = vmul.f32 %v839, %v839
    %v1102 = vmul.f32 %v840, %v840
    %v1103 = vmul.f32 %v841, %v841
    %v1104 = vmul.f32 %v842, %v842
    %v1105 = vmul.f32 %v843, %v843
    %v1106 = vmul.f32 %v844, %v844
    %v1107 = vmul.f32 %v845, %v845
    %v1108 = vmul.f32 %v846, %v846
    %v1109 = vmul.f32 %v847, %v847
    %v1110 = vmul.f32 %v848, %v848
    %v1111 = vmul.f32 %v849, %v849
    %v1112 = vmul.f32 %v850, %v850
    %v1113 = vmul.f32 %v851, %v851
    %v1114 = vmul.f32 %v852, %v852
    %v1115 = vmul.f32 %v853, %v853
    %v1116 = vmul.f32 %v854, %v854
    %v1117 = vadd.f32 %v1053, %v1054
    %v1118 = vadd.f32 %v1117, %v1055
    %v1119 = vadd.f32 %v1118, %v1056
    %v1120 = vadd.f32 %v1119, %v1057
    %v1121 = vadd.f32 %v1120, %v1058
    %v1122 = vadd.f32 %v1121, %v1059
    %v1123 = vadd.f32 %v1122, %v1060
    %v1124 = vadd.f32 %v1123, %v1061
    %v1125 = vadd.f32 %v1124, %v1062
    %v1126 = vadd.f32 %v1125, %v1063
    %v1127 = vadd.f32 %v1126, %v1064
    %v1128 = vadd.f32 %v1127, %v1065
    %v1129 = vadd.f32 %v1128, %v1066
    %v1130 = vadd.f32 %v1129, %v1067
    %v1131 = vadd.f32 %v1130, %v1068
    %v1132 = vadd.f32 %v1131, %v1069
    %v1133 = vadd.f32 %v1132, %v1070
    %v1134 = vadd.f32 %v1133, %v1071
    %v1135 = vadd.f32 %v1134, %v1072
    %v1136 = vadd.f32 %v1135, %v1073
    %v1137 = vadd.f32 %v1136, %v1074
    %v1138 = vadd.f32 %v1137, %v1075
    %v1139 = vadd.f32 %v1138, %v1076
    %v1140 = vadd.f32 %v1139, %v1077
    %v1141 = vadd.f32 %v1140, %v1078
    %v1142 = vadd.f32 %v1141, %v1079
    %v1143 = vadd.f32 %v1142, %v1080
    %v1144 = vadd.f32 %v1143, %v1081
    %v1145 = vadd.f32 %v1144, %v1082
    %v1146 = vadd.f32 %v1145, %v1083
    %v1147 = vadd.f32 %v1146, %v1084
    %v1148 = vadd.f32 %v1147, %v1085
    %v1149 = vadd.f32 %v1148, %v1086
    %v1150 = vadd.f32 %v1149, %v1087
    %v1151 = vadd.f32 %v1150, %v1088
    %v1152 = vadd.f32 %v1151, %v1089
    %v1153 = vadd.f32 %v1152, %v1090
    %v1154 = vadd.f32 %v1153, %v1091
    %v1155 = vadd.f32 %v1154, %v1092
    %v1156 = vadd.f32 %v1155, %v1093
    %v1157 = vadd.f32 %v1156, %v1094
    %v1158 = vadd.f32 %v1157, %v1095
    %v1159 = vadd.f32 %v1158, %v1096
    %v1160 = vadd.f32 %v1159, %v1097
    %v1161 = vadd.f32 %v1160, %v1098
    %v1162 = vadd.f32 %v1161, %v1099
    %v1163 = vadd.f32 %v1162, %v1100
    %v1164 = vadd.f32 %v1163, %v1101
    %v1165 = vadd.f32 %v1164, %v1102
    %v1166 = vadd.f32 %v1165, %v1103
    %v1167 = vadd.f32 %v1166, %v1104
    %v1168 = vadd.f32 %v1167, %v1105
    %v1169 = vadd.f32 %v1168, %v1106
    %v1170 = vadd.f32 %v1169, %v1107
    %v1171 = vadd.f32 %v1170, %v1108
    %v1172 = vadd.f32 %v1171, %v1109
    %v1173 = vadd.f32 %v1172, %v1110
    %v1174 = vadd.f32 %v1173, %v1111
    %v1175 = vadd.f32 %v1174, %v1112
    %v1176 = vadd.f32 %v1175, %v1113
    %v1177 = vadd.f32 %v1176, %v1114
    %v1178 = vadd.f32 %v1177, %v1115
    %v1179 = vadd.f32 %v1178, %v1116
    %v1180 = vrot.slane %v1179, 4
    %v1181 = vadd.f32 %v1179, %v1180
    %v1182 = vrot.slane %v1181, 2
    %v1183 = vadd.f32 %v1181, %v1182
    %v1184 = vrot.slane %v1183, 1
    %v1185 = vadd.f32 %v1183, %v1184
    %1186 = vst [vmem:[%s3 + $0x1] sm:$0x1] %v1185
  $region17: #{basic_block_enc.4} parent=0 // pred_fallthru
    _
  // Predicated region
  $region18: #{basic_block_enc.4} parent=0 // pred_check
    _
  $region19: #{basic_block_enc.4} parent=0 // pred_check_branch
    %1188 = sbr.rel (0) target = $region21
  $region20: #{basic_block_enc.4} parent=0 // pred_region
    _
  $region21: #{basic_block_enc.4} parent=0 // pred_fallthru
    _
  // Predicated region
  $region22: #{basic_block_enc.4} parent=0 // pred_check
    _
  $region23: #{basic_block_enc.4} parent=0 // pred_check_branch
    %1190 = sbr.rel (0) target = $region25
  $region24: #{basic_block_enc.4} parent=0 // pred_region
    _
  $region25: #{basic_block_enc.4} parent=0 // pred_fallthru
    _
  // Predicated region
  $region26: #{basic_block_enc.4} parent=0 // pred_check
    _
  $region27: #{basic_block_enc.4} parent=0 // pred_check_branch
    %1192 = sbr.rel (0) target = $region29
  $region28: #{basic_block_enc.4} parent=0 // pred_region
    _
  $region29: #{basic_block_enc.4} parent=0 // pred_fallthru
    _
  // Predicated region
  $region30: #{basic_block_enc.4} parent=0 // pred_check
    _
  $region31: #{basic_block_enc.4} parent=0 // pred_check_branch
    %1194 = sbr.rel (0) target = $region33
  $region32: #{basic_block_enc.4} parent=0 // pred_region
    _
  $region33: #{basic_block_enc.4} parent=0 // pred_fallthru
    _

// kernel: basic_block_enc.7
$region0: #{basic_block_enc.7}
  #allocation0 [shape = 'u32[]', space=smem, size = 0x4, offset = 0x4, fixed_abs, tag = 'smem constant byte address 0x4 - core index']
  #allocation1 [shape = 'u32[72,128]{1,0:T(1,128)}', space=vmem, size = 0x9000, scoped, tag = 'internal scratch']
  %s0 = inlined_call_operand.vmem [shape: bf16[512,128], index: 0, kind: input, shape index: {}]
  %s1 = inlined_call_operand.vmem [shape: f32[2,128], index: 1, kind: input, shape index: {}]
  %s2 = inlined_call_operand.vmem [shape: bf16[512,128], index: 2, kind: input, shape index: {}]
  %s3 = inlined_call_operand.vmem [shape: f32[512,128], index: 3, kind: output, shape index: {}]
  %s4 = sld [smem:[#allocation0]]
  $region22: #{basic_block_enc.7} parent=0
    _
  %s6 = ssub.s32 1, %s4
  %s7 = scalar_select 0, %s6, %s4
  // Predicated region
  $region2: #{basic_block_enc.7} parent=0 // pred_check
    _
  $region3: #{basic_block_enc.7} parent=0 // pred_check_branch
    %9 = sbr.rel (0) target = $region5
  $region4: #{basic_block_enc.7} parent=0 // pred_region
    _
  $region5: #{basic_block_enc.7} parent=0 // pred_fallthru
    _
  // Predicated region
  $region6: #{basic_block_enc.7} parent=0 // pred_check
    _
  $region7: #{basic_block_enc.7} parent=0 // pred_check_branch
    %11 = sbr.rel (0) target = $region9
  $region8: #{basic_block_enc.7} parent=0 // pred_region
    _
  $region9: #{basic_block_enc.7} parent=0 // pred_fallthru
    _
  // Predicated region
  $region10: #{basic_block_enc.7} parent=0 // pred_check
    _
  $region11: #{basic_block_enc.7} parent=0 // pred_check_branch
    %13 = sbr.rel (0) target = $region13
  $region12: #{basic_block_enc.7} parent=0 // pred_region
    _
  $region13: #{basic_block_enc.7} parent=0 // pred_fallthru
    _
  %v14 = vld [vmem:[%s0] sm:$0xf]
  %v15 = vld [vmem:[%s0 + $0x4] sm:$0xf]
  %v16 = vld [vmem:[%s0 + $0x8] sm:$0xf]
  %v17 = vld [vmem:[%s0 + $0xc] sm:$0xf]
  %v18 = vld [vmem:[%s0 + $0x10] sm:$0xf]
  %v19 = vld [vmem:[%s0 + $0x14] sm:$0xf]
  %v20 = vld [vmem:[%s0 + $0x18] sm:$0xf]
  %v21 = vld [vmem:[%s0 + $0x1c] sm:$0xf]
  %v22 = vld [vmem:[%s0 + $0x20] sm:$0xf]
  %v23 = vld [vmem:[%s0 + $0x24] sm:$0xf]
  %v24 = vld [vmem:[%s0 + $0x28] sm:$0xf]
  %v25 = vld [vmem:[%s0 + $0x2c] sm:$0xf]
  %v26 = vld [vmem:[%s0 + $0x30] sm:$0xf]
  %v27 = vld [vmem:[%s0 + $0x34] sm:$0xf]
  %v28 = vld [vmem:[%s0 + $0x38] sm:$0xf]
  %v29 = vld [vmem:[%s0 + $0x3c] sm:$0xf]
  %v30 = vld [vmem:[%s0 + $0x40] sm:$0xf]
  %v31 = vld [vmem:[%s0 + $0x44] sm:$0xf]
  %v32 = vld [vmem:[%s0 + $0x48] sm:$0xf]
  %v33 = vld [vmem:[%s0 + $0x4c] sm:$0xf]
  %v34 = vld [vmem:[%s0 + $0x50] sm:$0xf]
  %v35 = vld [vmem:[%s0 + $0x54] sm:$0xf]
  %v36 = vld [vmem:[%s0 + $0x58] sm:$0xf]
  %v37 = vld [vmem:[%s0 + $0x5c] sm:$0xf]
  %v38 = vld [vmem:[%s0 + $0x60] sm:$0xf]
  %v39 = vld [vmem:[%s0 + $0x64] sm:$0xf]
  %v40 = vld [vmem:[%s0 + $0x68] sm:$0xf]
  %v41 = vld [vmem:[%s0 + $0x6c] sm:$0xf]
  %v42 = vld [vmem:[%s0 + $0x70] sm:$0xf]
  %v43 = vld [vmem:[%s0 + $0x74] sm:$0xf]
  %v44 = vld [vmem:[%s0 + $0x78] sm:$0xf]
  %v45 = vld [vmem:[%s0 + $0x7c] sm:$0xf]
  %v46 = vld [vmem:[%s0 + $0x80] sm:$0xf]
  %v47 = vld [vmem:[%s0 + $0x84] sm:$0xf]
  %v48 = vld [vmem:[%s0 + $0x88] sm:$0xf]
  %v49 = vld [vmem:[%s0 + $0x8c] sm:$0xf]
  %v50 = vld [vmem:[%s0 + $0x90] sm:$0xf]
  %v51 = vld [vmem:[%s0 + $0x94] sm:$0xf]
  %v52 = vld [vmem:[%s0 + $0x98] sm:$0xf]
  %v53 = vld [vmem:[%s0 + $0x9c] sm:$0xf]
  %v54 = vld [vmem:[%s0 + $0xa0] sm:$0xf]
  %v55 = vld [vmem:[%s0 + $0xa4] sm:$0xf]
  %v56 = vld [vmem:[%s0 + $0xa8] sm:$0xf]
  %v57 = vld [vmem:[%s0 + $0xac] sm:$0xf]
  %v58 = vld [vmem:[%s0 + $0xb0] sm:$0xf]
  %v59 = vld [vmem:[%s0 + $0xb4] sm:$0xf]
  %v60 = vld [vmem:[%s0 + $0xb8] sm:$0xf]
  %v61 = vld [vmem:[%s0 + $0xbc] sm:$0xf]
  %v62 = vld [vmem:[%s0 + $0xc0] sm:$0xf]
  %v63 = vld [vmem:[%s0 + $0xc4] sm:$0xf]
  %v64 = vld [vmem:[%s0 + $0xc8] sm:$0xf]
  %v65 = vld [vmem:[%s0 + $0xcc] sm:$0xf]
  %v66 = vld [vmem:[%s0 + $0xd0] sm:$0xf]
  %v67 = vld [vmem:[%s0 + $0xd4] sm:$0xf]
  %v68 = vld [vmem:[%s0 + $0xd8] sm:$0xf]
  %v69 = vld [vmem:[%s0 + $0xdc] sm:$0xf]
  %v70 = vld [vmem:[%s0 + $0xe0] sm:$0xf]
  %v71 = vld [vmem:[%s0 + $0xe4] sm:$0xf]
  %v72 = vld [vmem:[%s0 + $0xe8] sm:$0xf]
  %v73 = vld [vmem:[%s0 + $0xec] sm:$0xf]
  %v74 = vld [vmem:[%s0 + $0xf0] sm:$0xf]
  %v75 = vld [vmem:[%s0 + $0xf4] sm:$0xf]
  %v76 = vld [vmem:[%s0 + $0xf8] sm:$0xf]
  %v77 = vld [vmem:[%s0 + $0xfc] sm:$0xf]
  %v78 = vunpack.c.l.bf16 %v14
  %v79 = vunpack.c.l.bf16 %v15
  %v80 = vunpack.c.l.bf16 %v16
  %v81 = vunpack.c.l.bf16 %v17
  %v82 = vunpack.c.l.bf16 %v18
  %v83 = vunpack.c.l.bf16 %v19
  %v84 = vunpack.c.l.bf16 %v20
  %v85 = vunpack.c.l.bf16 %v21
  %v86 = vunpack.c.l.bf16 %v22
  %v87 = vunpack.c.l.bf16 %v23
  %v88 = vunpack.c.l.bf16 %v24
  %v89 = vunpack.c.l.bf16 %v25
  %v90 = vunpack.c.l.bf16 %v26
  %v91 = vunpack.c.l.bf16 %v27
  %v92 = vunpack.c.l.bf16 %v28
  %v93 = vunpack.c.l.bf16 %v29
  %v94 = vunpack.c.l.bf16 %v30
  %v95 = vunpack.c.l.bf16 %v31
  %v96 = vunpack.c.l.bf16 %v32
  %v97 = vunpack.c.l.bf16 %v33
  %v98 = vunpack.c.l.bf16 %v34
  %v99 = vunpack.c.l.bf16 %v35
  %v100 = vunpack.c.l.bf16 %v36
  %v101 = vunpack.c.l.bf16 %v37
  %v102 = vunpack.c.l.bf16 %v38
  %v103 = vunpack.c.l.bf16 %v39
  %v104 = vunpack.c.l.bf16 %v40
  %v105 = vunpack.c.l.bf16 %v41
  %v106 = vunpack.c.l.bf16 %v42
  %v107 = vunpack.c.l.bf16 %v43
  %v108 = vunpack.c.l.bf16 %v44
  %v109 = vunpack.c.l.bf16 %v45
  %v110 = vunpack.c.l.bf16 %v46
  %v111 = vunpack.c.l.bf16 %v47
  %v112 = vunpack.c.l.bf16 %v48
  %v113 = vunpack.c.l.bf16 %v49
  %v114 = vunpack.c.l.bf16 %v50
  %v115 = vunpack.c.l.bf16 %v51
  %v116 = vunpack.c.l.bf16 %v52
  %v117 = vunpack.c.l.bf16 %v53
  %v118 = vunpack.c.l.bf16 %v54
  %v119 = vunpack.c.l.bf16 %v55
  %v120 = vunpack.c.l.bf16 %v56
  %v121 = vunpack.c.l.bf16 %v57
  %v122 = vunpack.c.l.bf16 %v58
  %v123 = vunpack.c.l.bf16 %v59
  %v124 = vunpack.c.l.bf16 %v60
  %v125 = vunpack.c.l.bf16 %v61
  %v126 = vunpack.c.l.bf16 %v62
  %v127 = vunpack.c.l.bf16 %v63
  %v128 = vunpack.c.l.bf16 %v64
  %v129 = vunpack.c.l.bf16 %v65
  %v130 = vunpack.c.l.bf16 %v66
  %v131 = vunpack.c.l.bf16 %v67
  %v132 = vunpack.c.l.bf16 %v68
  %v133 = vunpack.c.l.bf16 %v69
  %v134 = vunpack.c.l.bf16 %v70
  %v135 = vunpack.c.l.bf16 %v71
  %v136 = vunpack.c.l.bf16 %v72
  %v137 = vunpack.c.l.bf16 %v73
  %v138 = vunpack.c.l.bf16 %v74
  %v139 = vunpack.c.l.bf16 %v75
  %v140 = vunpack.c.l.bf16 %v76
  %v141 = vunpack.c.l.bf16 %v77
  %v142 = vld [vmem:[%s1] sm:$0x1]
  %v143 = vperm.slane %v142, 0
  %v144 = vmul.f32 %v78, %v143
  %v145 = vmul.f32 %v79, %v143
  %v146 = vmul.f32 %v80, %v143
  %v147 = vmul.f32 %v81, %v143
  %v148 = vmul.f32 %v82, %v143
  %v149 = vmul.f32 %v83, %v143
  %v150 = vmul.f32 %v84, %v143
  %v151 = vmul.f32 %v85, %v143
  %v152 = vmul.f32 %v86, %v143
  %v153 = vmul.f32 %v87, %v143
  %v154 = vmul.f32 %v88, %v143
  %v155 = vmul.f32 %v89, %v143
  %v156 = vmul.f32 %v90, %v143
  %v157 = vmul.f32 %v91, %v143
  %v158 = vmul.f32 %v92, %v143
  %v159 = vmul.f32 %v93, %v143
  %v160 = vmul.f32 %v94, %v143
  %v161 = vmul.f32 %v95, %v143
  %v162 = vmul.f32 %v96, %v143
  %v163 = vmul.f32 %v97, %v143
  %v164 = vmul.f32 %v98, %v143
  %v165 = vmul.f32 %v99, %v143
  %v166 = vmul.f32 %v100, %v143
  %v167 = vmul.f32 %v101, %v143
  %v168 = vmul.f32 %v102, %v143
  %v169 = vmul.f32 %v103, %v143
  %v170 = vmul.f32 %v104, %v143
  %v171 = vmul.f32 %v105, %v143
  %v172 = vmul.f32 %v106, %v143
  %v173 = vmul.f32 %v107, %v143
  %v174 = vmul.f32 %v108, %v143
  %v175 = vmul.f32 %v109, %v143
  %v176 = vmul.f32 %v110, %v143
  %v177 = vmul.f32 %v111, %v143
  %v178 = vmul.f32 %v112, %v143
  %v179 = vmul.f32 %v113, %v143
  %v180 = vmul.f32 %v114, %v143
  %v181 = vmul.f32 %v115, %v143
  %v182 = vmul.f32 %v116, %v143
  %v183 = vmul.f32 %v117, %v143
  %v184 = vmul.f32 %v118, %v143
  %v185 = vmul.f32 %v119, %v143
  %v186 = vmul.f32 %v120, %v143
  %v187 = vmul.f32 %v121, %v143
  %v188 = vmul.f32 %v122, %v143
  %v189 = vmul.f32 %v123, %v143
  %v190 = vmul.f32 %v124, %v143
  %v191 = vmul.f32 %v125, %v143
  %v192 = vmul.f32 %v126, %v143
  %v193 = vmul.f32 %v127, %v143
  %v194 = vmul.f32 %v128, %v143
  %v195 = vmul.f32 %v129, %v143
  %v196 = vmul.f32 %v130, %v143
  %v197 = vmul.f32 %v131, %v143
  %v198 = vmul.f32 %v132, %v143
  %v199 = vmul.f32 %v133, %v143
  %v200 = vmul.f32 %v134, %v143
  %v201 = vmul.f32 %v135, %v143
  %v202 = vmul.f32 %v136, %v143
  %v203 = vmul.f32 %v137, %v143
  %v204 = vmul.f32 %v138, %v143
  %v205 = vmul.f32 %v139, %v143
  %v206 = vmul.f32 %v140, %v143
  %v207 = vmul.f32 %v141, %v143
  %v208 = vld [vmem:[%s1 + $0x1] sm:$0x1]
  %v209 = vperm.slane %v208, 0
  %v210 = vadd.f32 %v144, %v209
  %v211 = vadd.f32 %v145, %v209
  %v212 = vadd.f32 %v146, %v209
  %v213 = vadd.f32 %v147, %v209
  %v214 = vadd.f32 %v148, %v209
  %v215 = vadd.f32 %v149, %v209
  %v216 = vadd.f32 %v150, %v209
  %v217 = vadd.f32 %v151, %v209
  %v218 = vadd.f32 %v152, %v209
  %v219 = vadd.f32 %v153, %v209
  %v220 = vadd.f32 %v154, %v209
  %v221 = vadd.f32 %v155, %v209
  %v222 = vadd.f32 %v156, %v209
  %v223 = vadd.f32 %v157, %v209
  %v224 = vadd.f32 %v158, %v209
  %v225 = vadd.f32 %v159, %v209
  %v226 = vadd.f32 %v160, %v209
  %v227 = vadd.f32 %v161, %v209
  %v228 = vadd.f32 %v162, %v209
  %v229 = vadd.f32 %v163, %v209
  %v230 = vadd.f32 %v164, %v209
  %v231 = vadd.f32 %v165, %v209
  %v232 = vadd.f32 %v166, %v209
  %v233 = vadd.f32 %v167, %v209
  %v234 = vadd.f32 %v168, %v209
  %v235 = vadd.f32 %v169, %v209
  %v236 = vadd.f32 %v170, %v209
  %v237 = vadd.f32 %v171, %v209
  %v238 = vadd.f32 %v172, %v209
  %v239 = vadd.f32 %v173, %v209
  %v240 = vadd.f32 %v174, %v209
  %v241 = vadd.f32 %v175, %v209
  %v242 = vadd.f32 %v176, %v209
  %v243 = vadd.f32 %v177, %v209
  %v244 = vadd.f32 %v178, %v209
  %v245 = vadd.f32 %v179, %v209
  %v246 = vadd.f32 %v180, %v209
  %v247 = vadd.f32 %v181, %v209
  %v248 = vadd.f32 %v182, %v209
  %v249 = vadd.f32 %v183, %v209
  %v250 = vadd.f32 %v184, %v209
  %v251 = vadd.f32 %v185, %v209
  %v252 = vadd.f32 %v186, %v209
  %v253 = vadd.f32 %v187, %v209
  %v254 = vadd.f32 %v188, %v209
  %v255 = vadd.f32 %v189, %v209
  %v256 = vadd.f32 %v190, %v209
  %v257 = vadd.f32 %v191, %v209
  %v258 = vadd.f32 %v192, %v209
  %v259 = vadd.f32 %v193, %v209
  %v260 = vadd.f32 %v194, %v209
  %v261 = vadd.f32 %v195, %v209
  %v262 = vadd.f32 %v196, %v209
  %v263 = vadd.f32 %v197, %v209
  %v264 = vadd.f32 %v198, %v209
  %v265 = vadd.f32 %v199, %v209
  %v266 = vadd.f32 %v200, %v209
  %v267 = vadd.f32 %v201, %v209
  %v268 = vadd.f32 %v202, %v209
  %v269 = vadd.f32 %v203, %v209
  %v270 = vadd.f32 %v204, %v209
  %v271 = vadd.f32 %v205, %v209
  %v272 = vadd.f32 %v206, %v209
  %v273 = vadd.f32 %v207, %v209
  %v274 = vld [vmem:[%s2] sm:$0xf]
  %v275 = vld [vmem:[%s2 + $0x4] sm:$0xf]
  %v276 = vld [vmem:[%s2 + $0x8] sm:$0xf]
  %v277 = vld [vmem:[%s2 + $0xc] sm:$0xf]
  %v278 = vld [vmem:[%s2 + $0x10] sm:$0xf]
  %v279 = vld [vmem:[%s2 + $0x14] sm:$0xf]
  %v280 = vld [vmem:[%s2 + $0x18] sm:$0xf]
  %v281 = vld [vmem:[%s2 + $0x1c] sm:$0xf]
  %v282 = vld [vmem:[%s2 + $0x20] sm:$0xf]
  %v283 = vld [vmem:[%s2 + $0x24] sm:$0xf]
  %v284 = vld [vmem:[%s2 + $0x28] sm:$0xf]
  %v285 = vld [vmem:[%s2 + $0x2c] sm:$0xf]
  %v286 = vld [vmem:[%s2 + $0x30] sm:$0xf]
  %v287 = vld [vmem:[%s2 + $0x34] sm:$0xf]
  %v288 = vld [vmem:[%s2 + $0x38] sm:$0xf]
  %v289 = vld [vmem:[%s2 + $0x3c] sm:$0xf]
  %v290 = vld [vmem:[%s2 + $0x40] sm:$0xf]
  %v291 = vld [vmem:[%s2 + $0x44] sm:$0xf]
  %v292 = vld [vmem:[%s2 + $0x48] sm:$0xf]
  %v293 = vld [vmem:[%s2 + $0x4c] sm:$0xf]
  %v294 = vld [vmem:[%s2 + $0x50] sm:$0xf]
  %v295 = vld [vmem:[%s2 + $0x54] sm:$0xf]
  %v296 = vld [vmem:[%s2 + $0x58] sm:$0xf]
  %v297 = vld [vmem:[%s2 + $0x5c] sm:$0xf]
  %v298 = vld [vmem:[%s2 + $0x60] sm:$0xf]
  %v299 = vld [vmem:[%s2 + $0x64] sm:$0xf]
  %v300 = vld [vmem:[%s2 + $0x68] sm:$0xf]
  %v301 = vld [vmem:[%s2 + $0x6c] sm:$0xf]
  %v302 = vld [vmem:[%s2 + $0x70] sm:$0xf]
  %v303 = vld [vmem:[%s2 + $0x74] sm:$0xf]
  %v304 = vld [vmem:[%s2 + $0x78] sm:$0xf]
  %v305 = vld [vmem:[%s2 + $0x7c] sm:$0xf]
  %v306 = vld [vmem:[%s2 + $0x80] sm:$0xf]
  %v307 = vld [vmem:[%s2 + $0x84] sm:$0xf]
  %v308 = vld [vmem:[%s2 + $0x88] sm:$0xf]
  %v309 = vld [vmem:[%s2 + $0x8c] sm:$0xf]
  %v310 = vld [vmem:[%s2 + $0x90] sm:$0xf]
  %v311 = vld [vmem:[%s2 + $0x94] sm:$0xf]
  %v312 = vld [vmem:[%s2 + $0x98] sm:$0xf]
  %v313 = vld [vmem:[%s2 + $0x9c] sm:$0xf]
  %v314 = vld [vmem:[%s2 + $0xa0] sm:$0xf]
  %v315 = vld [vmem:[%s2 + $0xa4] sm:$0xf]
  %v316 = vld [vmem:[%s2 + $0xa8] sm:$0xf]
  %v317 = vld [vmem:[%s2 + $0xac] sm:$0xf]
  %v318 = vld [vmem:[%s2 + $0xb0] sm:$0xf]
  %v319 = vld [vmem:[%s2 + $0xb4] sm:$0xf]
  %v320 = vld [vmem:[%s2 + $0xb8] sm:$0xf]
  %v321 = vld [vmem:[%s2 + $0xbc] sm:$0xf]
  %v322 = vld [vmem:[%s2 + $0xc0] sm:$0xf]
  %v323 = vld [vmem:[%s2 + $0xc4] sm:$0xf]
  %v324 = vld [vmem:[%s2 + $0xc8] sm:$0xf]
  %v325 = vld [vmem:[%s2 + $0xcc] sm:$0xf]
  %v326 = vld [vmem:[%s2 + $0xd0] sm:$0xf]
  %v327 = vld [vmem:[%s2 + $0xd4] sm:$0xf]
  %v328 = vld [vmem:[%s2 + $0xd8] sm:$0xf]
  %v329 = vld [vmem:[%s2 + $0xdc] sm:$0xf]
  %v330 = vld [vmem:[%s2 + $0xe0] sm:$0xf]
  %v331 = vld [vmem:[%s2 + $0xe4] sm:$0xf]
  %v332 = vld [vmem:[%s2 + $0xe8] sm:$0xf]
  %v333 = vld [vmem:[%s2 + $0xec] sm:$0xf]
  %v334 = vld [vmem:[%s2 + $0xf0] sm:$0xf]
  %v335 = vld [vmem:[%s2 + $0xf4] sm:$0xf]
  %v336 = vld [vmem:[%s2 + $0xf8] sm:$0xf]
  %v337 = vld [vmem:[%s2 + $0xfc] sm:$0xf]
  %v338 = vunpack.c.l.bf16 %v274
  %v339 = vunpack.c.l.bf16 %v275
  %v340 = vunpack.c.l.bf16 %v276
  %v341 = vunpack.c.l.bf16 %v277
  %v342 = vunpack.c.l.bf16 %v278
  %v343 = vunpack.c.l.bf16 %v279
  %v344 = vunpack.c.l.bf16 %v280
  %v345 = vunpack.c.l.bf16 %v281
  %v346 = vunpack.c.l.bf16 %v282
  %v347 = vunpack.c.l.bf16 %v283
  %v348 = vunpack.c.l.bf16 %v284
  %v349 = vunpack.c.l.bf16 %v285
  %v350 = vunpack.c.l.bf16 %v286
  %v351 = vunpack.c.l.bf16 %v287
  %v352 = vunpack.c.l.bf16 %v288
  %v353 = vunpack.c.l.bf16 %v289
  %v354 = vunpack.c.l.bf16 %v290
  %v355 = vunpack.c.l.bf16 %v291
  %v356 = vunpack.c.l.bf16 %v292
  %v357 = vunpack.c.l.bf16 %v293
  %v358 = vunpack.c.l.bf16 %v294
  %v359 = vunpack.c.l.bf16 %v295
  %v360 = vunpack.c.l.bf16 %v296
  %v361 = vunpack.c.l.bf16 %v297
  %v362 = vunpack.c.l.bf16 %v298
  %v363 = vunpack.c.l.bf16 %v299
  %v364 = vunpack.c.l.bf16 %v300
  %v365 = vunpack.c.l.bf16 %v301
  %v366 = vunpack.c.l.bf16 %v302
  %v367 = vunpack.c.l.bf16 %v303
  %v368 = vunpack.c.l.bf16 %v304
  %v369 = vunpack.c.l.bf16 %v305
  %v370 = vunpack.c.l.bf16 %v306
  %v371 = vunpack.c.l.bf16 %v307
  %v372 = vunpack.c.l.bf16 %v308
  %v373 = vunpack.c.l.bf16 %v309
  %v374 = vunpack.c.l.bf16 %v310
  %v375 = vunpack.c.l.bf16 %v311
  %v376 = vunpack.c.l.bf16 %v312
  %v377 = vunpack.c.l.bf16 %v313
  %v378 = vunpack.c.l.bf16 %v314
  %v379 = vunpack.c.l.bf16 %v315
  %v380 = vunpack.c.l.bf16 %v316
  %v381 = vunpack.c.l.bf16 %v317
  %v382 = vunpack.c.l.bf16 %v318
  %v383 = vunpack.c.l.bf16 %v319
  %v384 = vunpack.c.l.bf16 %v320
  %v385 = vunpack.c.l.bf16 %v321
  %v386 = vunpack.c.l.bf16 %v322
  %v387 = vunpack.c.l.bf16 %v323
  %v388 = vunpack.c.l.bf16 %v324
  %v389 = vunpack.c.l.bf16 %v325
  %v390 = vunpack.c.l.bf16 %v326
  %v391 = vunpack.c.l.bf16 %v327
  %v392 = vunpack.c.l.bf16 %v328
  %v393 = vunpack.c.l.bf16 %v329
  %v394 = vunpack.c.l.bf16 %v330
  %v395 = vunpack.c.l.bf16 %v331
  %v396 = vunpack.c.l.bf16 %v332
  %v397 = vunpack.c.l.bf16 %v333
  %v398 = vunpack.c.l.bf16 %v334
  %v399 = vunpack.c.l.bf16 %v335
  %v400 = vunpack.c.l.bf16 %v336
  %v401 = vunpack.c.l.bf16 %v337
  %v402 = vadd.f32 %v210, %v338
  %v403 = vadd.f32 %v211, %v339
  %v404 = vadd.f32 %v212, %v340
  %v405 = vadd.f32 %v213, %v341
  %v406 = vadd.f32 %v214, %v342
  %v407 = vadd.f32 %v215, %v343
  %v408 = vadd.f32 %v216, %v344
  %v409 = vadd.f32 %v217, %v345
  %v410 = vadd.f32 %v218, %v346
  %v411 = vadd.f32 %v219, %v347
  %v412 = vadd.f32 %v220, %v348
  %v413 = vadd.f32 %v221, %v349
  %v414 = vadd.f32 %v222, %v350
  %v415 = vadd.f32 %v223, %v351
  %v416 = vadd.f32 %v224, %v352
  %v417 = vadd.f32 %v225, %v353
  %v418 = vadd.f32 %v226, %v354
  %v419 = vadd.f32 %v227, %v355
  %v420 = vadd.f32 %v228, %v356
  %v421 = vadd.f32 %v229, %v357
  %v422 = vadd.f32 %v230, %v358
  %v423 = vadd.f32 %v231, %v359
  %v424 = vadd.f32 %v232, %v360
  %v425 = vadd.f32 %v233, %v361
  %v426 = vadd.f32 %v234, %v362
  %v427 = vadd.f32 %v235, %v363
  %v428 = vadd.f32 %v236, %v364
  %v429 = vadd.f32 %v237, %v365
  %v430 = vadd.f32 %v238, %v366
  %v431 = vadd.f32 %v239, %v367
  %v432 = vadd.f32 %v240, %v368
  %v433 = vadd.f32 %v241, %v369
  %v434 = vadd.f32 %v242, %v370
  %v435 = vadd.f32 %v243, %v371
  %v436 = vadd.f32 %v244, %v372
  %v437 = vadd.f32 %v245, %v373
  %v438 = vadd.f32 %v246, %v374
  %v439 = vadd.f32 %v247, %v375
  %v440 = vadd.f32 %v248, %v376
  %v441 = vadd.f32 %v249, %v377
  %v442 = vadd.f32 %v250, %v378
  %v443 = vadd.f32 %v251, %v379
  %v444 = vadd.f32 %v252, %v380
  %v445 = vadd.f32 %v253, %v381
  %v446 = vadd.f32 %v254, %v382
  %v447 = vadd.f32 %v255, %v383
  %v448 = vadd.f32 %v256, %v384
  %v449 = vadd.f32 %v257, %v385
  %v450 = vadd.f32 %v258, %v386
  %v451 = vadd.f32 %v259, %v387
  %v452 = vadd.f32 %v260, %v388
  %v453 = vadd.f32 %v261, %v389
  %v454 = vadd.f32 %v262, %v390
  %v455 = vadd.f32 %v263, %v391
  %v456 = vadd.f32 %v264, %v392
  %v457 = vadd.f32 %v265, %v393
  %v458 = vadd.f32 %v266, %v394
  %v459 = vadd.f32 %v267, %v395
  %v460 = vadd.f32 %v268, %v396
  %v461 = vadd.f32 %v269, %v397
  %v462 = vadd.f32 %v270, %v398
  %v463 = vadd.f32 %v271, %v399
  %v464 = vadd.f32 %v272, %v400
  %v465 = vadd.f32 %v273, %v401
  %v466 = vmax.f32 %v402, 0.0
  %v467 = vmax.f32 %v403, 0.0
  %v468 = vmax.f32 %v404, 0.0
  %v469 = vmax.f32 %v405, 0.0
  %v470 = vmax.f32 %v406, 0.0
  %v471 = vmax.f32 %v407, 0.0
  %v472 = vmax.f32 %v408, 0.0
  %v473 = vmax.f32 %v409, 0.0
  %v474 = vmax.f32 %v410, 0.0
  %v475 = vmax.f32 %v411, 0.0
  %v476 = vmax.f32 %v412, 0.0
  %v477 = vmax.f32 %v413, 0.0
  %v478 = vmax.f32 %v414, 0.0
  %v479 = vmax.f32 %v415, 0.0
  %v480 = vmax.f32 %v416, 0.0
  %v481 = vmax.f32 %v417, 0.0
  %v482 = vmax.f32 %v418, 0.0
  %v483 = vmax.f32 %v419, 0.0
  %v484 = vmax.f32 %v420, 0.0
  %v485 = vmax.f32 %v421, 0.0
  %v486 = vmax.f32 %v422, 0.0
  %v487 = vmax.f32 %v423, 0.0
  %v488 = vmax.f32 %v424, 0.0
  %v489 = vmax.f32 %v425, 0.0
  %v490 = vmax.f32 %v426, 0.0
  %v491 = vmax.f32 %v427, 0.0
  %v492 = vmax.f32 %v428, 0.0
  %v493 = vmax.f32 %v429, 0.0
  %v494 = vmax.f32 %v430, 0.0
  %v495 = vmax.f32 %v431, 0.0
  %v496 = vmax.f32 %v432, 0.0
  %v497 = vmax.f32 %v433, 0.0
  %v498 = vmax.f32 %v434, 0.0
  %v499 = vmax.f32 %v435, 0.0
  %v500 = vmax.f32 %v436, 0.0
  %v501 = vmax.f32 %v437, 0.0
  %v502 = vmax.f32 %v438, 0.0
  %v503 = vmax.f32 %v439, 0.0
  %v504 = vmax.f32 %v440, 0.0
  %v505 = vmax.f32 %v441, 0.0
  %v506 = vmax.f32 %v442, 0.0
  %v507 = vmax.f32 %v443, 0.0
  %v508 = vmax.f32 %v444, 0.0
  %v509 = vmax.f32 %v445, 0.0
  %v510 = vmax.f32 %v446, 0.0
  %v511 = vmax.f32 %v447, 0.0
  %v512 = vmax.f32 %v448, 0.0
  %v513 = vmax.f32 %v449, 0.0
  %v514 = vmax.f32 %v450, 0.0
  %v515 = vmax.f32 %v451, 0.0
  %v516 = vmax.f32 %v452, 0.0
  %v517 = vmax.f32 %v453, 0.0
  %v518 = vmax.f32 %v454, 0.0
  %v519 = vmax.f32 %v455, 0.0
  %v520 = vmax.f32 %v456, 0.0
  %v521 = vmax.f32 %v457, 0.0
  %v522 = vmax.f32 %v458, 0.0
  %v523 = vmax.f32 %v459, 0.0
  %v524 = vmax.f32 %v460, 0.0
  %v525 = vmax.f32 %v461, 0.0
  %v526 = vmax.f32 %v462, 0.0
  %v527 = vmax.f32 %v463, 0.0
  %v528 = vmax.f32 %v464, 0.0
  %v529 = vmax.f32 %v465, 0.0
  %530 = vst [vmem:[%s3] sm:$0xff] %v466
  %531 = vst [vmem:[%s3 + $0x8] sm:$0xff] %v467
  %532 = vst [vmem:[%s3 + $0x10] sm:$0xff] %v468
  %533 = vst [vmem:[%s3 + $0x18] sm:$0xff] %v469
  %534 = vst [vmem:[%s3 + $0x20] sm:$0xff] %v470
  %535 = vst [vmem:[%s3 + $0x28] sm:$0xff] %v471
  %536 = vst [vmem:[%s3 + $0x30] sm:$0xff] %v472
  %537 = vst [vmem:[%s3 + $0x38] sm:$0xff] %v473
  %538 = vst [vmem:[%s3 + $0x40] sm:$0xff] %v474
  %539 = vst [vmem:[%s3 + $0x48] sm:$0xff] %v475
  %540 = vst [vmem:[%s3 + $0x50] sm:$0xff] %v476
  %541 = vst [vmem:[%s3 + $0x58] sm:$0xff] %v477
  %542 = vst [vmem:[%s3 + $0x60] sm:$0xff] %v478
  %543 = vst [vmem:[%s3 + $0x68] sm:$0xff] %v479
  %544 = vst [vmem:[%s3 + $0x70] sm:$0xff] %v480
  %545 = vst [vmem:[%s3 + $0x78] sm:$0xff] %v481
  %546 = vst [vmem:[%s3 + $0x80] sm:$0xff] %v482
  %547 = vst [vmem:[%s3 + $0x88] sm:$0xff] %v483
  %548 = vst [vmem:[%s3 + $0x90] sm:$0xff] %v484
  %549 = vst [vmem:[%s3 + $0x98] sm:$0xff] %v485
  %550 = vst [vmem:[%s3 + $0xa0] sm:$0xff] %v486
  %551 = vst [vmem:[%s3 + $0xa8] sm:$0xff] %v487
  %552 = vst [vmem:[%s3 + $0xb0] sm:$0xff] %v488
  %553 = vst [vmem:[%s3 + $0xb8] sm:$0xff] %v489
  %554 = vst [vmem:[%s3 + $0xc0] sm:$0xff] %v490
  %555 = vst [vmem:[%s3 + $0xc8] sm:$0xff] %v491
  %556 = vst [vmem:[%s3 + $0xd0] sm:$0xff] %v492
  %557 = vst [vmem:[%s3 + $0xd8] sm:$0xff] %v493
  %558 = vst [vmem:[%s3 + $0xe0] sm:$0xff] %v494
  %559 = vst [vmem:[%s3 + $0xe8] sm:$0xff] %v495
  %560 = vst [vmem:[%s3 + $0xf0] sm:$0xff] %v496
  %561 = vst [vmem:[%s3 + $0xf8] sm:$0xff] %v497
  %562 = vst [vmem:[%s3 + $0x100] sm:$0xff] %v498
  %563 = vst [vmem:[%s3 + $0x108] sm:$0xff] %v499
  %564 = vst [vmem:[%s3 + $0x110] sm:$0xff] %v500
  %565 = vst [vmem:[%s3 + $0x118] sm:$0xff] %v501
  %566 = vst [vmem:[%s3 + $0x120] sm:$0xff] %v502
  %567 = vst [vmem:[%s3 + $0x128] sm:$0xff] %v503
  %568 = vst [vmem:[%s3 + $0x130] sm:$0xff] %v504
  %569 = vst [vmem:[%s3 + $0x138] sm:$0xff] %v505
  %570 = vst [vmem:[%s3 + $0x140] sm:$0xff] %v506
  %571 = vst [vmem:[%s3 + $0x148] sm:$0xff] %v507
  %572 = vst [vmem:[%s3 + $0x150] sm:$0xff] %v508
  %573 = vst [vmem:[%s3 + $0x158] sm:$0xff] %v509
  %574 = vst [vmem:[%s3 + $0x160] sm:$0xff] %v510
  %575 = vst [vmem:[%s3 + $0x168] sm:$0xff] %v511
  %576 = vst [vmem:[%s3 + $0x170] sm:$0xff] %v512
  %577 = vst [vmem:[%s3 + $0x178] sm:$0xff] %v513
  %578 = vst [vmem:[%s3 + $0x180] sm:$0xff] %v514
  %579 = vst [vmem:[%s3 + $0x188] sm:$0xff] %v515
  %580 = vst [vmem:[%s3 + $0x190] sm:$0xff] %v516
  %581 = vst [vmem:[%s3 + $0x198] sm:$0xff] %v517
  %582 = vst [vmem:[%s3 + $0x1a0] sm:$0xff] %v518
  %583 = vst [vmem:[%s3 + $0x1a8] sm:$0xff] %v519
  %584 = vst [vmem:[%s3 + $0x1b0] sm:$0xff] %v520
  %585 = vst [vmem:[%s3 + $0x1b8] sm:$0xff] %v521
  %586 = vst [vmem:[%s3 + $0x1c0] sm:$0xff] %v522
  %587 = vst [vmem:[%s3 + $0x1c8] sm:$0xff] %v523
  %588 = vst [vmem:[%s3 + $0x1d0] sm:$0xff] %v524
  %589 = vst [vmem:[%s3 + $0x1d8] sm:$0xff] %v525
  %590 = vst [vmem:[%s3 + $0x1e0] sm:$0xff] %v526
  %591 = vst [vmem:[%s3 + $0x1e8] sm:$0xff] %v527
  %592 = vst [vmem:[%s3 + $0x1f0] sm:$0xff] %v528
  %593 = vst [vmem:[%s3 + $0x1f8] sm:$0xff] %v529
  // Predicated region
  $region14: #{basic_block_enc.7} parent=0 // pred_check
    _
  $region15: #{basic_block_enc.7} parent=0 // pred_check_branch
    %595 = sbr.rel (0) target = $region17
  $region16: #{basic_block_enc.7} parent=0 // pred_region
    _
  $region17: #{basic_block_enc.7} parent=0 // pred_fallthru
    _
  // Predicated region
  $region18: #{basic_block_enc.7} parent=0 // pred_check
    _
  $region19: #{basic_block_enc.7} parent=0 // pred_check_branch
    %597 = sbr.rel (0) target = $region21
  $region20: #{basic_block_enc.7} parent=0 // pred_region
    _
  $region21: #{basic_block_enc.7} parent=0 // pred_fallthru
    _

</llo_original>
